<compile_context>
chip_gen: v7x
topology: tpu7x:2x2x1
jax: 0.10.0
libtpu: 0.0.40
codegen_flags: <defaults>
</compile_context>

<pallas_src>
import math
import jax
import jax.numpy as jnp
from jax import lax
from jax.experimental import pallas as pl
from jax.experimental.pallas import tpu as pltpu


def _layer_norm(x, gamma, beta, eps=1e-5):
    mu = jnp.mean(x, axis=-1, keepdims=True)
    var = jnp.mean((x - mu) ** 2, axis=-1, keepdims=True)
    return (x - mu) * lax.rsqrt(var + eps) * gamma + beta


def _make_encoder_layer_kernel(n_head, d_k, d_model, q_tile, mxu_dtype,
                               return_attn):
    fast = mxu_dtype != jnp.float32

    def kernel(x_ref, wqkv_ref, bqkv_ref, wo_ref, bo_ref,
               g1_ref, be1_ref, w1_ref, bb1_ref, w2_ref, bb2_ref,
               g2_ref, be2_ref, *rest):
        if return_attn:
            out_ref, attn_ref, qh_ref, kh_ref, vh_ref = rest
        else:
            out_ref, qh_ref, kh_ref, vh_ref = rest

        L = x_ref.shape[1]
        qt = pl.program_id(1)

        # ---- once per batch element: fused QKV projection, one MXU pass ----
        @pl.when(qt == 0)
        def _():
            x_full = x_ref[0]                                    # [L, D] f32
            qkv = jnp.dot(x_full.astype(mxu_dtype), wqkv_ref[...],
                          preferred_element_type=jnp.float32) + bqkv_ref[...]

            def heads(y):                                        # [L,D]->[H,L,d_k]
                return (y.reshape(L, n_head, d_k)
                         .transpose(1, 0, 2).astype(mxu_dtype))

            qh_ref[...] = heads(qkv[:, :d_model])   # 1/sqrt(d_k) folded into Wq
            kh_ref[...] = heads(qkv[:, d_model:2 * d_model])
            vh_ref[...] = heads(qkv[:, 2 * d_model:])

        q0 = pl.multiple_of(qt * q_tile, q_tile)
        qh = qh_ref[:, pl.ds(q0, q_tile), :]                     # [H, TQ, d_k]

        # ---- attention for this q-tile (full key axis resident in VMEM) ----
        s = jnp.einsum('hqd,hkd->hqk', qh, kh_ref[...],
                       preferred_element_type=jnp.float32)       # [H, TQ, L]
        # TODO(synk): slf_attn_mask=None path only; masked attention not wired in.
        s = s - jnp.max(s, axis=-1, keepdims=True)
        e = jnp.exp(s)
        denom = jnp.sum(e, axis=-1, keepdims=True)
        if fast:
            p = e * pl.reciprocal(denom, approx=True)   # EUP slot, frees VALU
        else:
            p = e / denom
        if return_attn:
            attn_ref[0] = p.astype(attn_ref.dtype)

        ctx = jnp.einsum('hqk,hkd->hqd', p.astype(mxu_dtype), vh_ref[...],
                         preferred_element_type=jnp.float32)     # [H, TQ, d_k]

        # concat(heads) @ Wo: single K=D contraction (better MXU depth than d_k)
        ctx_cat = ctx.transpose(1, 0, 2).reshape(q_tile, d_model)
        proj = jnp.dot(ctx_cat.astype(mxu_dtype), wo_ref[...],
                       preferred_element_type=jnp.float32) + bo_ref[...]

        x_q = x_ref[0, pl.ds(q0, q_tile), :]                     # [TQ, D] f32
        h1 = _layer_norm(proj + x_q, g1_ref[...], be1_ref[...])  # res + LN

        # ---- position-wise FFN (1x1 conv == per-position linear) ----
        ff = jnp.dot(h1.astype(mxu_dtype), w1_ref[...],
                     preferred_element_type=jnp.float32) + bb1_ref[...]
        ff = jnp.maximum(ff, 0.0)                                # ReLU
        ff = jnp.dot(ff.astype(mxu_dtype), w2_ref[...],
                     preferred_element_type=jnp.float32) + bb2_ref[...]
        out = _layer_norm(ff + h1, g2_ref[...], be2_ref[...])    # res + LN

        out_ref[0] = out.astype(out_ref.dtype)

    return kernel


def _pick_q_tile(L):
    if L <= 128:
        return L
    for t in (128, 64, 32, 16, 8):
        if L % t == 0:
            return t
    return L


def _default_vmem_limit(L, D, d_inner, n_head, d_k, q_tile,
                        mxu_dtype, attn_dtype, return_attn):
    """Explicit scoped-VMEM request derived from the actual block sizes."""
    mb = jnp.dtype(mxu_dtype).itemsize
    ab = jnp.dtype(attn_dtype).itemsize
    pad = lambda n: -(-n // 128) * 128          # minor-dim lane padding
    weights = (D * pad(3 * D) + D * pad(D) + D * pad(d_inner)
               + d_inner * pad(D)) * mb
    vectors = (pad(3 * D) + 8 * pad(D) + pad(d_inner)) * 4
    x_blk = L * pad(D) * 4
    out_blk = q_tile * pad(D) * 4
    attn_blk = n_head * q_tile * pad(L) * ab if return_attn else 0
    scratch = 3 * n_head * L * pad(d_k) * mb
    inter = (3 * n_head * q_tile * pad(L) * 4
             + 2 * q_tile * pad(d_inner) * 4 + 4 * q_tile * pad(D) * 4)
    est = 2 * (weights + vectors + x_blk + out_blk + attn_blk) + scratch + inter
    limit = max(int(est * 1.5) + (8 << 20), 32 << 20)
    cap = 100 << 20                              # ~100 MiB target on v5e/v6e
    try:                                         # stay under physical VMEM (v7x)
        cap = min(cap, int(pltpu.get_tpu_info().vmem_capacity_bytes) - (8 << 20))
    except Exception:
        pass
    return min(limit, max(cap, 32 << 20))


def encoder_layer(x, params, n_head, *, mxu_dtype=jnp.bfloat16,
                  return_attn=True, attn_dtype=jnp.bfloat16,
                  q_tile=None, vmem_limit_bytes=None):
    """x: [B, L, d_model] f32 -> (enc_outputs [B,L,D], attn [B,H,L,L]) or enc_outputs."""
    B, L, D = x.shape
    d_k = D // n_head
    if q_tile is None:
        q_tile = _pick_q_tile(L)
    assert L % q_tile == 0
    n_qt = L // q_tile

    # One-time (outside the kernel) weight prep: fold 1/sqrt(d_k) into the Q
    # projection, fuse QKV, cast matmul weights to the MXU dtype.  Biases / LN
    # parameters stay f32.
    scale = 1.0 / math.sqrt(float(d_k))
    wqkv = jnp.concatenate([params["wq"] * scale, params["wk"], params["wv"]],
                           axis=1).astype(mxu_dtype)                 # [D, 3D]
    bqkv = jnp.concatenate([params["bq"] * scale, params["bk"], params["bv"]],
                           axis=1)                                   # [1, 3D] f32
    wo = params["wo"].astype(mxu_dtype)                              # [D, D]
    w1 = params["w1"].astype(mxu_dtype)
    w2 = params["w2"].astype(mxu_dtype)

    weight_args = [wqkv, bqkv, wo, params["bo"], params["g1"], params["be1"],
                   w1, params["bb1"], w2, params["bb2"],
                   params["g2"], params["be2"]]

    def const_spec(shape):
        return pl.BlockSpec(shape, lambda b, q: (0,) * len(shape))

    in_specs = [pl.BlockSpec((1, L, D), lambda b, q: (b, 0, 0))]
    in_specs += [const_spec(w.shape) for w in weight_args]

    out_spec_x = pl.BlockSpec((1, q_tile, D), lambda b, q: (b, q, 0))
    if return_attn:
        out_shape = (
            jax.ShapeDtypeStruct((B, L, D), x.dtype),
            jax.ShapeDtypeStruct((B, n_head, L, L), attn_dtype),
        )
        out_specs = (
            out_spec_x,
            pl.BlockSpec((1, n_head, q_tile, L), lambda b, q: (b, 0, q, 0)),
        )
    else:
        out_shape = jax.ShapeDtypeStruct((B, L, D), x.dtype)
        out_specs = out_spec_x

    # Head-major Q/K/V scratch, computed once per batch element at qt == 0 and
    # reused across the q-tile axis.
    scratch_shapes = [pltpu.VMEM((n_head, L, d_k), mxu_dtype) for _ in range(3)]

    if vmem_limit_bytes is None:
        vmem_limit_bytes = _default_vmem_limit(
            L, D, d_inner=w1.shape[1], n_head=n_head, d_k=d_k, q_tile=q_tile,
            mxu_dtype=mxu_dtype, attn_dtype=attn_dtype, return_attn=return_attn)

    return pl.pallas_call(
        _make_encoder_layer_kernel(n_head, d_k, D, q_tile, mxu_dtype,
                                   return_attn),
        out_shape=out_shape,
        grid_spec=pltpu.PrefetchScalarGridSpec(
            num_scalar_prefetch=0,
            grid=(B, n_qt),
            in_specs=in_specs,
            out_specs=out_specs,
            scratch_shapes=scratch_shapes,
        ),
        compiler_params=pltpu.CompilerParams(
            # q-tile axis carries the KV scratch -> "arbitrary"; B independent.
            dimension_semantics=("parallel", "arbitrary"),
            vmem_limit_bytes=vmem_limit_bytes,
        ),
    )(x, *weight_args)


def init_params(key, d_model, d_inner, n_head):
    ks = jax.random.split(key, 8)
    s = 0.02
    return {
        "wq": jax.random.normal(ks[0], (d_model, d_model), jnp.float32) * s,
        "bq": jnp.zeros((1, d_model), jnp.float32),
        "wk": jax.random.normal(ks[1], (d_model, d_model), jnp.float32) * s,
        "bk": jnp.zeros((1, d_model), jnp.float32),
        "wv": jax.random.normal(ks[2], (d_model, d_model), jnp.float32) * s,
        "bv": jnp.zeros((1, d_model), jnp.float32),
        "wo": jax.random.normal(ks[3], (d_model, d_model), jnp.float32) * s,
        "bo": jnp.zeros((1, d_model), jnp.float32),
        "g1": jnp.ones((1, d_model), jnp.float32),
        "be1": jnp.zeros((1, d_model), jnp.float32),
        "w1": jax.random.normal(ks[4], (d_model, d_inner), jnp.float32) * s,
        "bb1": jnp.zeros((1, d_inner), jnp.float32),
        "w2": jax.random.normal(ks[5], (d_inner, d_model), jnp.float32) * s,
        "bb2": jnp.zeros((1, d_model), jnp.float32),
        "g2": jnp.ones((1, d_model), jnp.float32),
        "be2": jnp.zeros((1, d_model), jnp.float32),
    }


def reference(x, p, n_head):
    """Pure-JAX reference for correctness check."""
    B, L, D = x.shape
    d_k = D // n_head
    q = x @ p["wq"] + p["bq"]
    k = x @ p["wk"] + p["bk"]
    v = x @ p["wv"] + p["bv"]
    q = q.reshape(B, L, n_head, d_k).transpose(0, 2, 1, 3)
    k = k.reshape(B, L, n_head, d_k).transpose(0, 2, 1, 3)
    v = v.reshape(B, L, n_head, d_k).transpose(0, 2, 1, 3)
    s = jnp.einsum("bhqd,bhkd->bhqk", q, k) / math.sqrt(d_k)
    attn = jax.nn.softmax(s, axis=-1)
    o = jnp.einsum("bhqk,bhkd->bhqd", attn, v).transpose(0, 2, 1, 3).reshape(B, L, D)
    proj = o @ p["wo"] + p["bo"]

    def ln(y, g, b, eps=1e-5):
        mu = jnp.mean(y, -1, keepdims=True)
        var = jnp.mean((y - mu) ** 2, -1, keepdims=True)
        return (y - mu) / jnp.sqrt(var + eps) * g + b

    h1 = ln(proj + x, p["g1"], p["be1"])
    ff = jnp.maximum(h1 @ p["w1"] + p["bb1"], 0.0) @ p["w2"] + p["bb2"]
    out = ln(ff + h1, p["g2"], p["be2"])
    return out, attn


if __name__ == "__main__":
    B, L, d_model, d_inner, n_head = 2, 8, 32, 64, 4

    key = jax.random.PRNGKey(0)
    kx, kp = jax.random.split(key)
    x = jax.random.normal(kx, (B, L, d_model), jnp.float32)
    params = init_params(kp, d_model, d_inner, n_head)

    ref_out, ref_attn = reference(x, params, n_head)

    # Exact path: f32 MXU operands, exact softmax division, f32 attn output.
    out_f32, attn_f32 = encoder_layer(x, params, n_head, mxu_dtype=jnp.float32,
                                      attn_dtype=jnp.float32)
    jax.block_until_ready((out_f32, attn_f32))
    assert out_f32.shape == (B, L, d_model)
    assert attn_f32.shape == (B, n_head, L, L)
    assert jnp.allclose(out_f32, ref_out, atol=1e-4, rtol=1e-4)
    assert jnp.allclose(attn_f32, ref_attn, atol=1e-4, rtol=1e-4)

    # Fast (default) path: bf16 MXU + bf16 attn output + EUP approx reciprocal.
    out_bf, attn_bf = encoder_layer(x, params, n_head)
    jax.block_until_ready((out_bf, attn_bf))
    assert jnp.allclose(out_bf, ref_out, atol=5e-2, rtol=5e-2)
    assert jnp.allclose(attn_bf.astype(jnp.float32), ref_attn,
                        atol=5e-2, rtol=5e-2)

    # Output-only path: skips the O(L^2) attention HBM writeback entirely.
    out_only = encoder_layer(x, params, n_head, mxu_dtype=jnp.float32,
                             return_attn=False)
    jax.block_until_ready(out_only)
    assert out_only.shape == (B, L, d_model)
    assert jnp.allclose(out_only, ref_out, atol=1e-4, rtol=1e-4)

    # Exercise the q-tiled path (multiple q tiles per batch element).
    L2 = 256
    x2 = jax.random.normal(jax.random.PRNGKey(1), (B, L2, d_model), jnp.float32)
    ref_out2, ref_attn2 = reference(x2, params, n_head)
    out2, attn2 = encoder_layer(x2, params, n_head, mxu_dtype=jnp.float32,
                                attn_dtype=jnp.float32, q_tile=128)
    jax.block_until_ready((out2, attn2))
    assert jnp.allclose(out2, ref_out2, atol=1e-4, rtol=1e-4)
    assert jnp.allclose(attn2, ref_attn2, atol=1e-4, rtol=1e-4)

    print("KERNEL_OK")
</pallas_src>

<mosaic_0001>
module attributes {stable_mosaic.version = 11 : i64} {
  func.func @kernel(%arg0: i32, %arg1: i32, %arg2: memref<1x8x32xf32, #tpu.memory_space<vmem>>, %arg3: memref<32x96xf32, #tpu.memory_space<vmem>>, %arg4: memref<1x96xf32, #tpu.memory_space<vmem>>, %arg5: memref<32x32xf32, #tpu.memory_space<vmem>>, %arg6: memref<1x32xf32, #tpu.memory_space<vmem>>, %arg7: memref<1x32xf32, #tpu.memory_space<vmem>>, %arg8: memref<1x32xf32, #tpu.memory_space<vmem>>, %arg9: memref<32x64xf32, #tpu.memory_space<vmem>>, %arg10: memref<1x64xf32, #tpu.memory_space<vmem>>, %arg11: memref<64x32xf32, #tpu.memory_space<vmem>>, %arg12: memref<1x32xf32, #tpu.memory_space<vmem>>, %arg13: memref<1x32xf32, #tpu.memory_space<vmem>>, %arg14: memref<1x32xf32, #tpu.memory_space<vmem>>, %arg15: memref<1x8x32xf32, #tpu.memory_space<vmem>>, %arg16: memref<1x4x8x8xf32, #tpu.memory_space<vmem>>, %arg17: memref<4x8x8xf32, #tpu.memory_space<vmem>>, %arg18: memref<4x8x8xf32, #tpu.memory_space<vmem>>, %arg19: memref<4x8x8xf32, #tpu.memory_space<vmem>>) attributes {dimension_semantics = [#tpu.dimension_semantics<parallel>, #tpu.dimension_semantics<arbitrary>], iteration_bounds = array<i64: 2, 1>, scalar_prefetch = 0 : i64, scratch_operands = 3 : i64, tpu.core_type = #tpu.core_type<tc>, window_params = [{transform_indices = @transform_0, window_bounds = array<i64: 1, 8, 32>}, {pipeline_mode = #tpu.pipeline_mode<synchronous>, transform_indices = @transform_1, window_bounds = array<i64: 32, 96>}, {pipeline_mode = #tpu.pipeline_mode<synchronous>, transform_indices = @transform_2, window_bounds = array<i64: 1, 96>}, {pipeline_mode = #tpu.pipeline_mode<synchronous>, transform_indices = @transform_3, window_bounds = array<i64: 32, 32>}, {pipeline_mode = #tpu.pipeline_mode<synchronous>, transform_indices = @transform_4, window_bounds = array<i64: 1, 32>}, {pipeline_mode = #tpu.pipeline_mode<synchronous>, transform_indices = @transform_5, window_bounds = array<i64: 1, 32>}, {pipeline_mode = #tpu.pipeline_mode<synchronous>, transform_indices = @transform_6, window_bounds = array<i64: 1, 32>}, {pipeline_mode = #tpu.pipeline_mode<synchronous>, transform_indices = @transform_7, window_bounds = array<i64: 32, 64>}, {pipeline_mode = #tpu.pipeline_mode<synchronous>, transform_indices = @transform_8, window_bounds = array<i64: 1, 64>}, {pipeline_mode = #tpu.pipeline_mode<synchronous>, transform_indices = @transform_9, window_bounds = array<i64: 64, 32>}, {pipeline_mode = #tpu.pipeline_mode<synchronous>, transform_indices = @transform_10, window_bounds = array<i64: 1, 32>}, {pipeline_mode = #tpu.pipeline_mode<synchronous>, transform_indices = @transform_11, window_bounds = array<i64: 1, 32>}, {pipeline_mode = #tpu.pipeline_mode<synchronous>, transform_indices = @transform_12, window_bounds = array<i64: 1, 32>}, {transform_indices = @transform_13, window_bounds = array<i64: 1, 8, 32>}, {transform_indices = @transform_14, window_bounds = array<i64: 1, 4, 8, 8>}]} {
    %c0_i32 = arith.constant 0 : i32
    %0 = arith.cmpi eq, %arg1, %c0_i32 : i32
    %1 = arith.extui %0 : i1 to i32
    %c0_i32_0 = arith.constant 0 : i32
    %2 = arith.cmpi ne, %1, %c0_i32_0 : i32
    scf.if %2 {
      %c0_54 = arith.constant 0 : index
      %c0_55 = arith.constant 0 : index
      %c0_56 = arith.constant 0 : index
      %98 = vector.load %arg2[%c0_54, %c0_55, %c0_56] : memref<1x8x32xf32, #tpu.memory_space<vmem>>, vector<1x8x32xf32>
      %99 = vector.shape_cast %98 : vector<1x8x32xf32> to vector<8x32xf32>
      %c0_57 = arith.constant 0 : index
      %c0_58 = arith.constant 0 : index
      %100 = vector.load %arg3[%c0_57, %c0_58] : memref<32x96xf32, #tpu.memory_space<vmem>>, vector<32x96xf32>
      %cst_59 = arith.constant dense<0.000000e+00> : vector<8x96xf32>
      %101 = tpu.matmul %99, %100, %cst_59 {dimension_numbers = #tpu.dot_dimension_numbers<[1], [0], [0], [1], [0, 0, 1, 1], [], []>} : vector<8x32xf32>, vector<32x96xf32>, vector<8x96xf32> -> vector<8x96xf32>
      %c0_60 = arith.constant 0 : index
      %c0_61 = arith.constant 0 : index
      %102 = vector.load %arg4[%c0_60, %c0_61] : memref<1x96xf32, #tpu.memory_space<vmem>>, vector<1x96xf32>
      %103 = vector.broadcast %102 : vector<1x96xf32> to vector<8x96xf32>
      %104 = arith.addf %101, %103 : vector<8x96xf32>
      %105 = vector.extract_strided_slice %104 {offsets = [0, 0], sizes = [8, 32], strides = [1, 1]} : vector<8x96xf32> to vector<8x32xf32>
      %106 = vector.shape_cast %105 : vector<8x32xf32> to vector<8x4x8xf32>
      %107 = tpu.transpose %106, [1, 0, 2] : vector<8x4x8xf32> -> vector<4x8x8xf32>
      %c0_62 = arith.constant 0 : index
      %c0_63 = arith.constant 0 : index
      %c0_64 = arith.constant 0 : index
      %108 = vector.load %arg17[%c0_62, %c0_63, %c0_64] : memref<4x8x8xf32, #tpu.memory_space<vmem>>, vector<4x8x8xf32>
      tpu.vector_store %arg17[%c0_62, %c0_63, %c0_64], %107 {strides = array<i32>} : memref<4x8x8xf32, #tpu.memory_space<vmem>>, vector<4x8x8xf32>,
      %109 = vector.extract_strided_slice %104 {offsets = [0, 32], sizes = [8, 32], strides = [1, 1]} : vector<8x96xf32> to vector<8x32xf32>
      %110 = vector.shape_cast %109 : vector<8x32xf32> to vector<8x4x8xf32>
      %111 = tpu.transpose %110, [1, 0, 2] : vector<8x4x8xf32> -> vector<4x8x8xf32>
      %c0_65 = arith.constant 0 : index
      %c0_66 = arith.constant 0 : index
      %c0_67 = arith.constant 0 : index
      %112 = vector.load %arg18[%c0_65, %c0_66, %c0_67] : memref<4x8x8xf32, #tpu.memory_space<vmem>>, vector<4x8x8xf32>
      tpu.vector_store %arg18[%c0_65, %c0_66, %c0_67], %111 {strides = array<i32>} : memref<4x8x8xf32, #tpu.memory_space<vmem>>, vector<4x8x8xf32>,
      %113 = vector.extract_strided_slice %104 {offsets = [0, 64], sizes = [8, 32], strides = [1, 1]} : vector<8x96xf32> to vector<8x32xf32>
      %114 = vector.shape_cast %113 : vector<8x32xf32> to vector<8x4x8xf32>
      %115 = tpu.transpose %114, [1, 0, 2] : vector<8x4x8xf32> -> vector<4x8x8xf32>
      %c0_68 = arith.constant 0 : index
      %c0_69 = arith.constant 0 : index
      %c0_70 = arith.constant 0 : index
      %116 = vector.load %arg19[%c0_68, %c0_69, %c0_70] : memref<4x8x8xf32, #tpu.memory_space<vmem>>, vector<4x8x8xf32>
      tpu.vector_store %arg19[%c0_68, %c0_69, %c0_70], %115 {strides = array<i32>} : memref<4x8x8xf32, #tpu.memory_space<vmem>>, vector<4x8x8xf32>,
    } else {
    }
    %c8_i32 = arith.constant 8 : i32
    %3 = arith.muli %arg1, %c8_i32 : i32
    %4 = tpu.assume_multiple %3, 8 : i32
    %c0 = arith.constant 0 : index
    %5 = arith.index_cast %4 : i32 to index
    %c0_1 = arith.constant 0 : index
    %6 = vector.load %arg17[%c0, %5, %c0_1] : memref<4x8x8xf32, #tpu.memory_space<vmem>>, vector<4x8x8xf32>
    %c0_2 = arith.constant 0 : index
    %c0_3 = arith.constant 0 : index
    %c0_4 = arith.constant 0 : index
    %7 = vector.load %arg18[%c0_2, %c0_3, %c0_4] : memref<4x8x8xf32, #tpu.memory_space<vmem>>, vector<4x8x8xf32>
    "tpu.trace_start"() <{level = 10 : i32, message = "hqd,hkd->hqk"}> : () -> ()
    %cst = arith.constant dense<0.000000e+00> : vector<4x8x8xf32>
    %8 = tpu.matmul %6, %7, %cst {dimension_numbers = #tpu.dot_dimension_numbers<[2], [2], [1], [1], [0, 0, 0, 1, 1, 1], [0], [0]>} : vector<4x8x8xf32>, vector<4x8x8xf32>, vector<4x8x8xf32> -> vector<4x8x8xf32>
    "tpu.trace_stop"() : () -> ()
    %cst_5 = arith.constant dense<0xFF800000> : vector<4x8xf32>
    %9 = vector.multi_reduction <maximumf>, %8, %cst_5 [2] : vector<4x8x8xf32> to vector<4x8xf32>
    %10 = vector.shape_cast %9 : vector<4x8xf32> to vector<4x8x1xf32>
    %11 = vector.broadcast %10 : vector<4x8x1xf32> to vector<4x8x8xf32>
    %12 = arith.subf %8, %11 : vector<4x8x8xf32>
    %13 = math.exp %12 : vector<4x8x8xf32>
    %cst_6 = arith.constant dense<0.000000e+00> : vector<4x8xf32>
    %14 = vector.multi_reduction <add>, %13, %cst_6 [2] : vector<4x8x8xf32> to vector<4x8xf32>
    %15 = vector.shape_cast %14 : vector<4x8xf32> to vector<4x8x1xf32>
    %16 = vector.broadcast %15 : vector<4x8x1xf32> to vector<4x8x8xf32>
    %17 = arith.divf %13, %16 : vector<4x8x8xf32>
    %c0_7 = arith.constant 0 : index
    %c0_8 = arith.constant 0 : index
    %c0_9 = arith.constant 0 : index
    %c0_10 = arith.constant 0 : index
    %18 = vector.load %arg16[%c0_7, %c0_8, %c0_9, %c0_10] : memref<1x4x8x8xf32, #tpu.memory_space<vmem>>, vector<1x4x8x8xf32>
    %19 = vector.shape_cast %18 : vector<1x4x8x8xf32> to vector<4x8x8xf32>
    %20 = vector.shape_cast %17 : vector<4x8x8xf32> to vector<1x4x8x8xf32>
    tpu.vector_store %arg16[%c0_7, %c0_8, %c0_9, %c0_10], %20 {strides = array<i32>} : memref<1x4x8x8xf32, #tpu.memory_space<vmem>>, vector<1x4x8x8xf32>,
    %c0_11 = arith.constant 0 : index
    %c0_12 = arith.constant 0 : index
    %c0_13 = arith.constant 0 : index
    %21 = vector.load %arg19[%c0_11, %c0_12, %c0_13] : memref<4x8x8xf32, #tpu.memory_space<vmem>>, vector<4x8x8xf32>
    "tpu.trace_start"() <{level = 10 : i32, message = "hqk,hkd->hqd"}> : () -> ()
    %cst_14 = arith.constant dense<0.000000e+00> : vector<4x8x8xf32>
    %22 = tpu.matmul %17, %21, %cst_14 {dimension_numbers = #tpu.dot_dimension_numbers<[2], [1], [1], [2], [0, 0, 0, 1, 1, 2], [0], [0]>} : vector<4x8x8xf32>, vector<4x8x8xf32>, vector<4x8x8xf32> -> vector<4x8x8xf32>
    "tpu.trace_stop"() : () -> ()
    %23 = tpu.transpose %22, [1, 0, 2] : vector<4x8x8xf32> -> vector<8x4x8xf32>
    %24 = vector.shape_cast %23 : vector<8x4x8xf32> to vector<8x32xf32>
    %c0_15 = arith.constant 0 : index
    %c0_16 = arith.constant 0 : index
    %25 = vector.load %arg5[%c0_15, %c0_16] : memref<32x32xf32, #tpu.memory_space<vmem>>, vector<32x32xf32>
    %cst_17 = arith.constant dense<0.000000e+00> : vector<8x32xf32>
    %26 = tpu.matmul %24, %25, %cst_17 {dimension_numbers = #tpu.dot_dimension_numbers<[1], [0], [0], [1], [0, 0, 1, 1], [], []>} : vector<8x32xf32>, vector<32x32xf32>, vector<8x32xf32> -> vector<8x32xf32>
    %c0_18 = arith.constant 0 : index
    %c0_19 = arith.constant 0 : index
    %27 = vector.load %arg6[%c0_18, %c0_19] : memref<1x32xf32, #tpu.memory_space<vmem>>, vector<1x32xf32>
    %28 = vector.broadcast %27 : vector<1x32xf32> to vector<8x32xf32>
    %29 = arith.addf %26, %28 : vector<8x32xf32>
    %c0_20 = arith.constant 0 : index
    %30 = arith.index_cast %4 : i32 to index
    %c0_21 = arith.constant 0 : index
    %31 = vector.load %arg2[%c0_20, %30, %c0_21] : memref<1x8x32xf32, #tpu.memory_space<vmem>>, vector<1x8x32xf32>
    %32 = vector.shape_cast %31 : vector<1x8x32xf32> to vector<8x32xf32>
    %33 = arith.addf %29, %32 : vector<8x32xf32>
    %c0_22 = arith.constant 0 : index
    %c0_23 = arith.constant 0 : index
    %34 = vector.load %arg7[%c0_22, %c0_23] : memref<1x32xf32, #tpu.memory_space<vmem>>, vector<1x32xf32>
    %c0_24 = arith.constant 0 : index
    %c0_25 = arith.constant 0 : index
    %35 = vector.load %arg8[%c0_24, %c0_25] : memref<1x32xf32, #tpu.memory_space<vmem>>, vector<1x32xf32>
    %cst_26 = arith.constant dense<0.000000e+00> : vector<8xf32>
    %36 = vector.multi_reduction <add>, %33, %cst_26 [1] : vector<8x32xf32> to vector<8xf32>
    %37 = vector.shape_cast %36 : vector<8xf32> to vector<8x1xf32>
    %cst_27 = arith.constant 3.200000e+01 : f32
    %38 = vector.broadcast %cst_27 : f32 to vector<8x1xf32>
    %39 = arith.divf %37, %38 : vector<8x1xf32>
    %40 = vector.broadcast %39 : vector<8x1xf32> to vector<8x32xf32>
    %41 = arith.subf %33, %40 : vector<8x32xf32>
    %42 = arith.mulf %41, %41 : vector<8x32xf32>
    %cst_28 = arith.constant dense<0.000000e+00> : vector<8xf32>
    %43 = vector.multi_reduction <add>, %42, %cst_28 [1] : vector<8x32xf32> to vector<8xf32>
    %44 = vector.shape_cast %43 : vector<8xf32> to vector<8x1xf32>
    %cst_29 = arith.constant 3.200000e+01 : f32
    %45 = vector.broadcast %cst_29 : f32 to vector<8x1xf32>
    %46 = arith.divf %44, %45 : vector<8x1xf32>
    %47 = vector.broadcast %39 : vector<8x1xf32> to vector<8x32xf32>
    %48 = arith.subf %33, %47 : vector<8x32xf32>
    %cst_30 = arith.constant 9.99999974E-6 : f32
    %49 = vector.broadcast %cst_30 : f32 to vector<8x1xf32>
    %50 = arith.addf %46, %49 : vector<8x1xf32>
    %51 = math.rsqrt %50 : vector<8x1xf32>
    %52 = vector.broadcast %51 : vector<8x1xf32> to vector<8x32xf32>
    %53 = arith.mulf %48, %52 : vector<8x32xf32>
    %54 = vector.broadcast %34 : vector<1x32xf32> to vector<8x32xf32>
    %55 = arith.mulf %53, %54 : vector<8x32xf32>
    %56 = vector.broadcast %35 : vector<1x32xf32> to vector<8x32xf32>
    %57 = arith.addf %55, %56 : vector<8x32xf32>
    %c0_31 = arith.constant 0 : index
    %c0_32 = arith.constant 0 : index
    %58 = vector.load %arg9[%c0_31, %c0_32] : memref<32x64xf32, #tpu.memory_space<vmem>>, vector<32x64xf32>
    %cst_33 = arith.constant dense<0.000000e+00> : vector<8x64xf32>
    %59 = tpu.matmul %57, %58, %cst_33 {dimension_numbers = #tpu.dot_dimension_numbers<[1], [0], [0], [1], [0, 0, 1, 1], [], []>} : vector<8x32xf32>, vector<32x64xf32>, vector<8x64xf32> -> vector<8x64xf32>
    %c0_34 = arith.constant 0 : index
    %c0_35 = arith.constant 0 : index
    %60 = vector.load %arg10[%c0_34, %c0_35] : memref<1x64xf32, #tpu.memory_space<vmem>>, vector<1x64xf32>
    %61 = vector.broadcast %60 : vector<1x64xf32> to vector<8x64xf32>
    %62 = arith.addf %59, %61 : vector<8x64xf32>
    %cst_36 = arith.constant 0.000000e+00 : f32
    %63 = vector.broadcast %cst_36 : f32 to vector<8x64xf32>
    %64 = arith.maximumf %62, %63 : vector<8x64xf32>
    %c0_37 = arith.constant 0 : index
    %c0_38 = arith.constant 0 : index
    %65 = vector.load %arg11[%c0_37, %c0_38] : memref<64x32xf32, #tpu.memory_space<vmem>>, vector<64x32xf32>
    %cst_39 = arith.constant dense<0.000000e+00> : vector<8x32xf32>
    %66 = tpu.matmul %64, %65, %cst_39 {dimension_numbers = #tpu.dot_dimension_numbers<[1], [0], [0], [1], [0, 0, 1, 1], [], []>} : vector<8x64xf32>, vector<64x32xf32>, vector<8x32xf32> -> vector<8x32xf32>
    %c0_40 = arith.constant 0 : index
    %c0_41 = arith.constant 0 : index
    %67 = vector.load %arg12[%c0_40, %c0_41] : memref<1x32xf32, #tpu.memory_space<vmem>>, vector<1x32xf32>
    %68 = vector.broadcast %67 : vector<1x32xf32> to vector<8x32xf32>
    %69 = arith.addf %66, %68 : vector<8x32xf32>
    %70 = arith.addf %69, %57 : vector<8x32xf32>
    %c0_42 = arith.constant 0 : index
    %c0_43 = arith.constant 0 : index
    %71 = vector.load %arg13[%c0_42, %c0_43] : memref<1x32xf32, #tpu.memory_space<vmem>>, vector<1x32xf32>
    %c0_44 = arith.constant 0 : index
    %c0_45 = arith.constant 0 : index
    %72 = vector.load %arg14[%c0_44, %c0_45] : memref<1x32xf32, #tpu.memory_space<vmem>>, vector<1x32xf32>
    %cst_46 = arith.constant dense<0.000000e+00> : vector<8xf32>
    %73 = vector.multi_reduction <add>, %70, %cst_46 [1] : vector<8x32xf32> to vector<8xf32>
    %74 = vector.shape_cast %73 : vector<8xf32> to vector<8x1xf32>
    %cst_47 = arith.constant 3.200000e+01 : f32
    %75 = vector.broadcast %cst_47 : f32 to vector<8x1xf32>
    %76 = arith.divf %74, %75 : vector<8x1xf32>
    %77 = vector.broadcast %76 : vector<8x1xf32> to vector<8x32xf32>
    %78 = arith.subf %70, %77 : vector<8x32xf32>
    %79 = arith.mulf %78, %78 : vector<8x32xf32>
    %cst_48 = arith.constant dense<0.000000e+00> : vector<8xf32>
    %80 = vector.multi_reduction <add>, %79, %cst_48 [1] : vector<8x32xf32> to vector<8xf32>
    %81 = vector.shape_cast %80 : vector<8xf32> to vector<8x1xf32>
    %cst_49 = arith.constant 3.200000e+01 : f32
    %82 = vector.broadcast %cst_49 : f32 to vector<8x1xf32>
    %83 = arith.divf %81, %82 : vector<8x1xf32>
    %84 = vector.broadcast %76 : vector<8x1xf32> to vector<8x32xf32>
    %85 = arith.subf %70, %84 : vector<8x32xf32>
    %cst_50 = arith.constant 9.99999974E-6 : f32
    %86 = vector.broadcast %cst_50 : f32 to vector<8x1xf32>
    %87 = arith.addf %83, %86 : vector<8x1xf32>
    %88 = math.rsqrt %87 : vector<8x1xf32>
    %89 = vector.broadcast %88 : vector<8x1xf32> to vector<8x32xf32>
    %90 = arith.mulf %85, %89 : vector<8x32xf32>
    %91 = vector.broadcast %71 : vector<1x32xf32> to vector<8x32xf32>
    %92 = arith.mulf %90, %91 : vector<8x32xf32>
    %93 = vector.broadcast %72 : vector<1x32xf32> to vector<8x32xf32>
    %94 = arith.addf %92, %93 : vector<8x32xf32>
    %c0_51 = arith.constant 0 : index
    %c0_52 = arith.constant 0 : index
    %c0_53 = arith.constant 0 : index
    %95 = vector.load %arg15[%c0_51, %c0_52, %c0_53] : memref<1x8x32xf32, #tpu.memory_space<vmem>>, vector<1x8x32xf32>
    %96 = vector.shape_cast %95 : vector<1x8x32xf32> to vector<8x32xf32>
    %97 = vector.shape_cast %94 : vector<8x32xf32> to vector<1x8x32xf32>
    tpu.vector_store %arg15[%c0_51, %c0_52, %c0_53], %97 {strides = array<i32>} : memref<1x8x32xf32, #tpu.memory_space<vmem>>, vector<1x8x32xf32>,
    return
  }
  func.func @transform_0(%arg0: i32, %arg1: i32) -> (i32, i32, i32) {
    %c0_i32 = arith.constant 0 : i32
    %c0_i32_0 = arith.constant 0 : i32
    %c0_i32_1 = arith.constant 0 : i32
    return %arg0, %c0_i32, %c0_i32_0 : i32, i32, i32
  }
  func.func @transform_1(%arg0: i32, %arg1: i32) -> (i32, i32) {
    %c0_i32 = arith.constant 0 : i32
    %c0_i32_0 = arith.constant 0 : i32
    %c0_i32_1 = arith.constant 0 : i32
    return %c0_i32, %c0_i32_0 : i32, i32
  }
  func.func @transform_2(%arg0: i32, %arg1: i32) -> (i32, i32) {
    %c0_i32 = arith.constant 0 : i32
    %c0_i32_0 = arith.constant 0 : i32
    %c0_i32_1 = arith.constant 0 : i32
    return %c0_i32, %c0_i32_0 : i32, i32
  }
  func.func @transform_3(%arg0: i32, %arg1: i32) -> (i32, i32) {
    %c0_i32 = arith.constant 0 : i32
    %c0_i32_0 = arith.constant 0 : i32
    %c0_i32_1 = arith.constant 0 : i32
    return %c0_i32, %c0_i32_0 : i32, i32
  }
  func.func @transform_4(%arg0: i32, %arg1: i32) -> (i32, i32) {
    %c0_i32 = arith.constant 0 : i32
    %c0_i32_0 = arith.constant 0 : i32
    %c0_i32_1 = arith.constant 0 : i32
    return %c0_i32, %c0_i32_0 : i32, i32
  }
  func.func @transform_5(%arg0: i32, %arg1: i32) -> (i32, i32) {
    %c0_i32 = arith.constant 0 : i32
    %c0_i32_0 = arith.constant 0 : i32
    %c0_i32_1 = arith.constant 0 : i32
    return %c0_i32, %c0_i32_0 : i32, i32
  }
  func.func @transform_6(%arg0: i32, %arg1: i32) -> (i32, i32) {
    %c0_i32 = arith.constant 0 : i32
    %c0_i32_0 = arith.constant 0 : i32
    %c0_i32_1 = arith.constant 0 : i32
    return %c0_i32, %c0_i32_0 : i32, i32
  }
  func.func @transform_7(%arg0: i32, %arg1: i32) -> (i32, i32) {
    %c0_i32 = arith.constant 0 : i32
    %c0_i32_0 = arith.constant 0 : i32
    %c0_i32_1 = arith.constant 0 : i32
    return %c0_i32, %c0_i32_0 : i32, i32
  }
  func.func @transform_8(%arg0: i32, %arg1: i32) -> (i32, i32) {
    %c0_i32 = arith.constant 0 : i32
    %c0_i32_0 = arith.constant 0 : i32
    %c0_i32_1 = arith.constant 0 : i32
    return %c0_i32, %c0_i32_0 : i32, i32
  }
  func.func @transform_9(%arg0: i32, %arg1: i32) -> (i32, i32) {
    %c0_i32 = arith.constant 0 : i32
    %c0_i32_0 = arith.constant 0 : i32
    %c0_i32_1 = arith.constant 0 : i32
    return %c0_i32, %c0_i32_0 : i32, i32
  }
  func.func @transform_10(%arg0: i32, %arg1: i32) -> (i32, i32) {
    %c0_i32 = arith.constant 0 : i32
    %c0_i32_0 = arith.constant 0 : i32
    %c0_i32_1 = arith.constant 0 : i32
    return %c0_i32, %c0_i32_0 : i32, i32
  }
  func.func @transform_11(%arg0: i32, %arg1: i32) -> (i32, i32) {
    %c0_i32 = arith.constant 0 : i32
    %c0_i32_0 = arith.constant 0 : i32
    %c0_i32_1 = arith.constant 0 : i32
    return %c0_i32, %c0_i32_0 : i32, i32
  }
  func.func @transform_12(%arg0: i32, %arg1: i32) -> (i32, i32) {
    %c0_i32 = arith.constant 0 : i32
    %c0_i32_0 = arith.constant 0 : i32
    %c0_i32_1 = arith.constant 0 : i32
    return %c0_i32, %c0_i32_0 : i32, i32
  }
  func.func @transform_13(%arg0: i32, %arg1: i32) -> (i32, i32, i32) {
    %c0_i32 = arith.constant 0 : i32
    %c0_i32_0 = arith.constant 0 : i32
    return %arg0, %arg1, %c0_i32 : i32, i32, i32
  }
  func.func @transform_14(%arg0: i32, %arg1: i32) -> (i32, i32, i32, i32) {
    %c0_i32 = arith.constant 0 : i32
    %c0_i32_0 = arith.constant 0 : i32
    %c0_i32_1 = arith.constant 0 : i32
    return %arg0, %c0_i32, %arg1, %c0_i32_0 : i32, i32, i32, i32
  }
}

</mosaic_0001>

<llo_original>
// kernel: tpu_custom_call.1
$region0: #{tpu_custom_call.1}
  #allocation0 [shape = 'u32[]', space=smem, size = 0x4, offset = 0x4, fixed_abs, tag = 'smem constant byte address 0x4 - core index']
  #allocation1 [shape = 'u32[144,128]{1,0:T(1,128)}', space=vmem, size = 0x12000, scoped, tag = 'internal scratch']
  #allocation2 [shape = 'f32[4,8,8]{2,1,0:T(8,128)}', space=vmem, size = 0x4000, scoped, tag = 'scratch operand']
  #allocation3 [shape = 'f32[4,8,8]{2,1,0:T(8,128)}', space=vmem, size = 0x4000, scoped, tag = 'scratch operand']
  #allocation4 [shape = 'f32[4,8,8]{2,1,0:T(8,128)}', space=vmem, size = 0x4000, scoped, tag = 'scratch operand']
  %s0 = inlined_call_operand.hbm [shape: f32[2,8,32], index: 0, kind: input, shape index: {}]
  %s1 = inlined_call_operand.vmem [shape: f32[32,96], index: 1, kind: input, shape index: {}]
  %s2 = inlined_call_operand.vmem [shape: f32[1,96], index: 2, kind: input, shape index: {}]
  %s3 = inlined_call_operand.vmem [shape: f32[32,32], index: 3, kind: input, shape index: {}]
  %s4 = inlined_call_operand.vmem [shape: f32[1,32], index: 4, kind: input, shape index: {}]
  %s5 = inlined_call_operand.hbm [shape: f32[1,32], index: 5, kind: input, shape index: {}]
  %s6 = inlined_call_operand.hbm [shape: f32[1,32], index: 6, kind: input, shape index: {}]
  %s7 = inlined_call_operand.vmem [shape: f32[32,64], index: 7, kind: input, shape index: {}]
  %s8 = inlined_call_operand.hbm [shape: f32[1,64], index: 8, kind: input, shape index: {}]
  %s9 = inlined_call_operand.vmem [shape: f32[64,32], index: 9, kind: input, shape index: {}]
  %s10 = inlined_call_operand.vmem [shape: f32[1,32], index: 10, kind: input, shape index: {}]
  %s11 = inlined_call_operand.vmem [shape: f32[1,32], index: 11, kind: input, shape index: {}]
  %s12 = inlined_call_operand.vmem [shape: f32[1,32], index: 12, kind: input, shape index: {}]
  %s13 = inlined_call_operand.hbm [shape: f32[2,8,32], index: 13, kind: output, shape index: {0}]
  %s14 = inlined_call_operand.hbm [shape: f32[2,4,8,8], index: 14, kind: output, shape index: {1}]
  %15 = xla_tuple %s13, %s14
  %s16 = sld [smem:[#allocation0]]
  $region113: #{tpu_custom_call.1} parent=0
    _
  %s18 = ssub.s32 1, %s16
  %s19 = scalar_select 0, %s18, %s16
  $region1: #{tpu_custom_call.1} parent=0
    #allocation5 [shape = 'u8[8192]{0}', space=vmem, size = 0x2000, scoped, tag = 'input window, operand 0']
    #allocation6 [shape = 's32[2]{0}', space=sflag, size = 0x8, scoped, tag = 'scoped memory for tpu_custom_call.1']
    #allocation7 [shape = 's32[2]{0}', space=sflag, size = 0x8, scoped, tag = 'scoped memory for tpu_custom_call.1']
    #allocation8 [shape = 'u8[512]{0}', space=vmem, size = 0x400, scoped, tag = 'input window, operand 5, single buffered']
    #allocation9 [shape = 's32[1]{0}', space=sflag, size = 0x4, scoped, tag = 'scoped memory for tpu_custom_call.1']
    #allocation10 [shape = 'u8[512]{0}', space=vmem, size = 0x400, scoped, tag = 'input window, operand 6, single buffered']
    #allocation11 [shape = 'u8[512]{0}', space=vmem, size = 0x400, scoped, tag = 'input window, operand 8, single buffered']
    #allocation12 [shape = 's32[1]{0}', space=sflag, size = 0x4, scoped, tag = 'scoped memory for tpu_custom_call.1']
    #allocation13 [shape = 'u8[8192]{0}', space=vmem, size = 0x2000, scoped, tag = 'output window, operand 0']
    #allocation14 [shape = 'u8[32768]{0}', space=vmem, size = 0x8000, scoped, tag = 'output window, operand 1']
    #allocation15 [shape = 's32[2]{0}', space=sflag, size = 0x8, scoped, tag = 'scoped memory for tpu_custom_call.1']
    %20 = vsyncpa [#allocation6], 0
    %s21 = scalar_lea.sflag [#allocation6], 1
    %22 = vsyncpa %s21, 0
    %23 = vsyncpa [#allocation9], 0
    %24 = vsyncpa [#allocation12], 0
    %25 = vsyncpa [#allocation7], 0
    %s26 = scalar_lea.sflag [#allocation7], 1
    %27 = vsyncpa %s26, 0
    %28 = vsyncpa [#allocation15], 0
    %s29 = scalar_lea.sflag [#allocation15], 1
    %30 = vsyncpa %s29, 0
    loop: start=0, step=1, limit=4
    $region2: #{tpu_custom_call.1} parent=1 // loop_pre_header
      _
    $region3: #{tpu_custom_call.1} parent=1 // loop_header
      %s32 = sphi 0, %s36
      %p33 = scmp.ge.s32.totalorder %s32, 4
      %s39 = sphi 0, %s51
      %s40 = sphi 0, %s47
      %s41 = sphi 0, %s39
      %s42 = sphi 0, %s40
      %s43 = sphi 0, %s41
      %s44 = sphi 0, %s42
      %s54 = sphi 0, %s56
      %s57 = sphi 0, %s54
      %s58 = sphi 0, %s57
      %s74 = sphi 0, %s58
      %s78 = sphi 0, %s78
      %s80 = sphi 0, %s78
      %s81 = sphi 0, %s80
      %s95 = sphi 0, %s81
      %s99 = sphi 0, %s99
      %s101 = sphi 0, %s99
      %s102 = sphi 0, %s101
      %s116 = sphi 0, %s102
      %s120 = sphi 0, %s120
      %s122 = sphi 0, %s120
      %s123 = sphi 0, %s122
      %s137 = sphi 0, %s123
      %s141 = sphi 0, %s141
      %s143 = sphi 0, %s141
      %s144 = sphi 0, %s143
      %s158 = sphi 0, %s144
      %s162 = sphi 0, %s162
      %s164 = sphi 0, %s162
      %s165 = sphi 0, %s164
      %s179 = sphi 0, %s165
      %s183 = sphi 0, %s183
      %s185 = sphi 0, %s183
      %s186 = sphi 0, %s185
      %s200 = sphi 0, %s186
      %s204 = sphi 0, %s204
      %s206 = sphi 0, %s204
      %s207 = sphi 0, %s206
      %s221 = sphi 0, %s207
      %s225 = sphi 0, %s225
      %s227 = sphi 0, %s225
      %s228 = sphi 0, %s227
      %s242 = sphi 0, %s228
      %s246 = sphi 0, %s246
      %s248 = sphi 0, %s246
      %s249 = sphi 0, %s248
      %s263 = sphi 0, %s249
      %s267 = sphi 0, %s267
      %s269 = sphi 0, %s267
      %s270 = sphi 0, %s269
      %s284 = sphi 0, %s270
      %s288 = sphi 0, %s288
      %s290 = sphi 0, %s288
      %s291 = sphi 0, %s290
      %s305 = sphi 0, %s291
      %s309 = sphi 0, %s309
      %s311 = sphi 0, %s309
      %s312 = sphi 0, %s311
      %s326 = sphi 0, %s312
      %s334 = sphi 0, %s336
      %s337 = sphi 0, %s334
      %s338 = sphi 0, %s337
      %s354 = sphi 0, %s338
      %s362 = sphi 0, %s364
      %s365 = sphi 0, %s362
      %s366 = sphi 0, %s365
      %s382 = sphi 0, %s366
    $region4: #{tpu_custom_call.1} parent=1 // loop_header_branch
      %35 = sbr.rel (%p33) target = $region8
    $region5: #{tpu_custom_call.1} parent=1 // loop_body
      %s37 = ssub.s32 %s32, 1
      %s38 = ssub.s32 %s32, 2
      %s45 = sadd.s32 1, %s40
      %p46 = scmp.ge.s32.totalorder %s45, 1
      %s47 = scalar_select %p46, 0, %s45
      %s48 = sadd.s32 1, %s39
      %s49 = scalar_select %p46, %s48, %s39
      %p50 = scmp.ge.s32.totalorder %s49, 2
      %s51 = scalar_select %p50, 0, %s49
      %s52 = ssub.s32 %s39, %s51
      %p53 = scmp.eq.s32.totalorder %s52, 0
      %s55 = sadd.s32 %s54, 1
      %s56 = scalar_select %p53, %s54, %s55
      %p59 = pneg %p53
      %p60 = scmp.eq.s32.totalorder %s32, 1
      %p61 = por %p59, %p60
      %p62 = scmp.ne.s32.totalorder %s54, %s57
      %p63 = scmp.eq.s32.totalorder %s32, 0
      %p64 = por %p62, %p63
      %p65 = scmp.ne.s32.totalorder %s54, %s57
      %p66 = scmp.eq.s32.totalorder %s37, 1
      %p67 = por %p65, %p66
      %p68 = scmp.ne.s32.totalorder %s57, %s58
      %p69 = scmp.eq.s32.totalorder %s37, 0
      %p70 = por %p68, %p69
      %p71 = scmp.ne.s32.totalorder %s57, %s58
      %p72 = scmp.eq.s32.totalorder %s38, 1
      %p73 = por %p71, %p72
      %p75 = scmp.ne.s32.totalorder %s58, %s74
      %p76 = scmp.eq.s32.totalorder %s38, 0
      %p77 = por %p75, %p76
      %s79 = sadd.s32 %s78, 1
      %p82 = scmp.eq.s32.totalorder %s32, 1
      %p83 = scmp.ne.s32.totalorder %s78, %s80
      %p84 = scmp.eq.s32.totalorder %s32, 0
      %p85 = por %p83, %p84
      %p86 = scmp.ne.s32.totalorder %s78, %s80
      %p87 = scmp.eq.s32.totalorder %s37, 1
      %p88 = por %p86, %p87
      %p89 = scmp.ne.s32.totalorder %s80, %s81
      %p90 = scmp.eq.s32.totalorder %s37, 0
      %p91 = por %p89, %p90
      %p92 = scmp.ne.s32.totalorder %s80, %s81
      %p93 = scmp.eq.s32.totalorder %s38, 1
      %p94 = por %p92, %p93
      %p96 = scmp.ne.s32.totalorder %s81, %s95
      %p97 = scmp.eq.s32.totalorder %s38, 0
      %p98 = por %p96, %p97
      %s100 = sadd.s32 %s99, 1
      %p103 = scmp.eq.s32.totalorder %s32, 1
      %p104 = scmp.ne.s32.totalorder %s99, %s101
      %p105 = scmp.eq.s32.totalorder %s32, 0
      %p106 = por %p104, %p105
      %p107 = scmp.ne.s32.totalorder %s99, %s101
      %p108 = scmp.eq.s32.totalorder %s37, 1
      %p109 = por %p107, %p108
      %p110 = scmp.ne.s32.totalorder %s101, %s102
      %p111 = scmp.eq.s32.totalorder %s37, 0
      %p112 = por %p110, %p111
      %p113 = scmp.ne.s32.totalorder %s101, %s102
      %p114 = scmp.eq.s32.totalorder %s38, 1
      %p115 = por %p113, %p114
      %p117 = scmp.ne.s32.totalorder %s102, %s116
      %p118 = scmp.eq.s32.totalorder %s38, 0
      %p119 = por %p117, %p118
      %s121 = sadd.s32 %s120, 1
      %p124 = scmp.eq.s32.totalorder %s32, 1
      %p125 = scmp.ne.s32.totalorder %s120, %s122
      %p126 = scmp.eq.s32.totalorder %s32, 0
      %p127 = por %p125, %p126
      %p128 = scmp.ne.s32.totalorder %s120, %s122
      %p129 = scmp.eq.s32.totalorder %s37, 1
      %p130 = por %p128, %p129
      %p131 = scmp.ne.s32.totalorder %s122, %s123
      %p132 = scmp.eq.s32.totalorder %s37, 0
      %p133 = por %p131, %p132
      %p134 = scmp.ne.s32.totalorder %s122, %s123
      %p135 = scmp.eq.s32.totalorder %s38, 1
      %p136 = por %p134, %p135
      %p138 = scmp.ne.s32.totalorder %s123, %s137
      %p139 = scmp.eq.s32.totalorder %s38, 0
      %p140 = por %p138, %p139
      %s142 = sadd.s32 %s141, 1
      %p145 = scmp.eq.s32.totalorder %s32, 1
      %p146 = scmp.ne.s32.totalorder %s141, %s143
      %p147 = scmp.eq.s32.totalorder %s32, 0
      %p148 = por %p146, %p147
      %p149 = scmp.ne.s32.totalorder %s141, %s143
      %p150 = scmp.eq.s32.totalorder %s37, 1
      %p151 = por %p149, %p150
      %p152 = scmp.ne.s32.totalorder %s143, %s144
      %p153 = scmp.eq.s32.totalorder %s37, 0
      %p154 = por %p152, %p153
      %p155 = scmp.ne.s32.totalorder %s143, %s144
      %p156 = scmp.eq.s32.totalorder %s38, 1
      %p157 = por %p155, %p156
      %p159 = scmp.ne.s32.totalorder %s144, %s158
      %p160 = scmp.eq.s32.totalorder %s38, 0
      %p161 = por %p159, %p160
      %s163 = sadd.s32 %s162, 1
      %p166 = scmp.eq.s32.totalorder %s32, 1
      %p167 = scmp.ne.s32.totalorder %s162, %s164
      %p168 = scmp.eq.s32.totalorder %s32, 0
      %p169 = por %p167, %p168
      %p170 = scmp.ne.s32.totalorder %s162, %s164
      %p171 = scmp.eq.s32.totalorder %s37, 1
      %p172 = por %p170, %p171
      %p173 = scmp.ne.s32.totalorder %s164, %s165
      %p174 = scmp.eq.s32.totalorder %s37, 0
      %p175 = por %p173, %p174
      %p176 = scmp.ne.s32.totalorder %s164, %s165
      %p177 = scmp.eq.s32.totalorder %s38, 1
      %p178 = por %p176, %p177
      %p180 = scmp.ne.s32.totalorder %s165, %s179
      %p181 = scmp.eq.s32.totalorder %s38, 0
      %p182 = por %p180, %p181
      %s184 = sadd.s32 %s183, 1
      %p187 = scmp.eq.s32.totalorder %s32, 1
      %p188 = scmp.ne.s32.totalorder %s183, %s185
      %p189 = scmp.eq.s32.totalorder %s32, 0
      %p190 = por %p188, %p189
      %p191 = scmp.ne.s32.totalorder %s183, %s185
      %p192 = scmp.eq.s32.totalorder %s37, 1
      %p193 = por %p191, %p192
      %p194 = scmp.ne.s32.totalorder %s185, %s186
      %p195 = scmp.eq.s32.totalorder %s37, 0
      %p196 = por %p194, %p195
      %p197 = scmp.ne.s32.totalorder %s185, %s186
      %p198 = scmp.eq.s32.totalorder %s38, 1
      %p199 = por %p197, %p198
      %p201 = scmp.ne.s32.totalorder %s186, %s200
      %p202 = scmp.eq.s32.totalorder %s38, 0
      %p203 = por %p201, %p202
      %s205 = sadd.s32 %s204, 1
      %p208 = scmp.eq.s32.totalorder %s32, 1
      %p209 = scmp.ne.s32.totalorder %s204, %s206
      %p210 = scmp.eq.s32.totalorder %s32, 0
      %p211 = por %p209, %p210
      %p212 = scmp.ne.s32.totalorder %s204, %s206
      %p213 = scmp.eq.s32.totalorder %s37, 1
      %p214 = por %p212, %p213
      %p215 = scmp.ne.s32.totalorder %s206, %s207
      %p216 = scmp.eq.s32.totalorder %s37, 0
      %p217 = por %p215, %p216
      %p218 = scmp.ne.s32.totalorder %s206, %s207
      %p219 = scmp.eq.s32.totalorder %s38, 1
      %p220 = por %p218, %p219
      %p222 = scmp.ne.s32.totalorder %s207, %s221
      %p223 = scmp.eq.s32.totalorder %s38, 0
      %p224 = por %p222, %p223
      %s226 = sadd.s32 %s225, 1
      %p229 = scmp.eq.s32.totalorder %s32, 1
      %p230 = scmp.ne.s32.totalorder %s225, %s227
      %p231 = scmp.eq.s32.totalorder %s32, 0
      %p232 = por %p230, %p231
      %p233 = scmp.ne.s32.totalorder %s225, %s227
      %p234 = scmp.eq.s32.totalorder %s37, 1
      %p235 = por %p233, %p234
      %p236 = scmp.ne.s32.totalorder %s227, %s228
      %p237 = scmp.eq.s32.totalorder %s37, 0
      %p238 = por %p236, %p237
      %p239 = scmp.ne.s32.totalorder %s227, %s228
      %p240 = scmp.eq.s32.totalorder %s38, 1
      %p241 = por %p239, %p240
      %p243 = scmp.ne.s32.totalorder %s228, %s242
      %p244 = scmp.eq.s32.totalorder %s38, 0
      %p245 = por %p243, %p244
      %s247 = sadd.s32 %s246, 1
      %p250 = scmp.eq.s32.totalorder %s32, 1
      %p251 = scmp.ne.s32.totalorder %s246, %s248
      %p252 = scmp.eq.s32.totalorder %s32, 0
      %p253 = por %p251, %p252
      %p254 = scmp.ne.s32.totalorder %s246, %s248
      %p255 = scmp.eq.s32.totalorder %s37, 1
      %p256 = por %p254, %p255
      %p257 = scmp.ne.s32.totalorder %s248, %s249
      %p258 = scmp.eq.s32.totalorder %s37, 0
      %p259 = por %p257, %p258
      %p260 = scmp.ne.s32.totalorder %s248, %s249
      %p261 = scmp.eq.s32.totalorder %s38, 1
      %p262 = por %p260, %p261
      %p264 = scmp.ne.s32.totalorder %s249, %s263
      %p265 = scmp.eq.s32.totalorder %s38, 0
      %p266 = por %p264, %p265
      %s268 = sadd.s32 %s267, 1
      %p271 = scmp.eq.s32.totalorder %s32, 1
      %p272 = scmp.ne.s32.totalorder %s267, %s269
      %p273 = scmp.eq.s32.totalorder %s32, 0
      %p274 = por %p272, %p273
      %p275 = scmp.ne.s32.totalorder %s267, %s269
      %p276 = scmp.eq.s32.totalorder %s37, 1
      %p277 = por %p275, %p276
      %p278 = scmp.ne.s32.totalorder %s269, %s270
      %p279 = scmp.eq.s32.totalorder %s37, 0
      %p280 = por %p278, %p279
      %p281 = scmp.ne.s32.totalorder %s269, %s270
      %p282 = scmp.eq.s32.totalorder %s38, 1
      %p283 = por %p281, %p282
      %p285 = scmp.ne.s32.totalorder %s270, %s284
      %p286 = scmp.eq.s32.totalorder %s38, 0
      %p287 = por %p285, %p286
      %s289 = sadd.s32 %s288, 1
      %p292 = scmp.eq.s32.totalorder %s32, 1
      %p293 = scmp.ne.s32.totalorder %s288, %s290
      %p294 = scmp.eq.s32.totalorder %s32, 0
      %p295 = por %p293, %p294
      %p296 = scmp.ne.s32.totalorder %s288, %s290
      %p297 = scmp.eq.s32.totalorder %s37, 1
      %p298 = por %p296, %p297
      %p299 = scmp.ne.s32.totalorder %s290, %s291
      %p300 = scmp.eq.s32.totalorder %s37, 0
      %p301 = por %p299, %p300
      %p302 = scmp.ne.s32.totalorder %s290, %s291
      %p303 = scmp.eq.s32.totalorder %s38, 1
      %p304 = por %p302, %p303
      %p306 = scmp.ne.s32.totalorder %s291, %s305
      %p307 = scmp.eq.s32.totalorder %s38, 0
      %p308 = por %p306, %p307
      %s310 = sadd.s32 %s309, 1
      %p313 = scmp.eq.s32.totalorder %s32, 1
      %p314 = scmp.ne.s32.totalorder %s309, %s311
      %p315 = scmp.eq.s32.totalorder %s32, 0
      %p316 = por %p314, %p315
      %p317 = scmp.ne.s32.totalorder %s309, %s311
      %p318 = scmp.eq.s32.totalorder %s37, 1
      %p319 = por %p317, %p318
      %p320 = scmp.ne.s32.totalorder %s311, %s312
      %p321 = scmp.eq.s32.totalorder %s37, 0
      %p322 = por %p320, %p321
      %p323 = scmp.ne.s32.totalorder %s311, %s312
      %p324 = scmp.eq.s32.totalorder %s38, 1
      %p325 = por %p323, %p324
      %p327 = scmp.ne.s32.totalorder %s312, %s326
      %p328 = scmp.eq.s32.totalorder %s38, 0
      %p329 = por %p327, %p328
      %s330 = ssub.s32 %s39, %s51
      %s331 = ssub.s32 %s40, %s47
      %s332 = sor.u32 %s330, %s331
      %p333 = scmp.eq.s32.totalorder %s332, 0
      %s335 = sadd.s32 %s334, 1
      %s336 = scalar_select %p333, %s334, %s335
      %p339 = pneg %p333
      %p340 = scmp.eq.s32.totalorder %s32, 1
      %p341 = por %p339, %p340
      %p342 = scmp.ne.s32.totalorder %s334, %s337
      %p343 = scmp.eq.s32.totalorder %s32, 0
      %p344 = por %p342, %p343
      %p345 = scmp.ne.s32.totalorder %s334, %s337
      %p346 = scmp.eq.s32.totalorder %s37, 1
      %p347 = por %p345, %p346
      %p348 = scmp.ne.s32.totalorder %s337, %s338
      %p349 = scmp.eq.s32.totalorder %s37, 0
      %p350 = por %p348, %p349
      %p351 = scmp.ne.s32.totalorder %s337, %s338
      %p352 = scmp.eq.s32.totalorder %s38, 1
      %p353 = por %p351, %p352
      %p355 = scmp.ne.s32.totalorder %s338, %s354
      %p356 = scmp.eq.s32.totalorder %s38, 0
      %p357 = por %p355, %p356
      %s358 = ssub.s32 %s39, %s51
      %s359 = ssub.s32 %s40, %s47
      %s360 = sor.u32 %s358, %s359
      %p361 = scmp.eq.s32.totalorder %s360, 0
      %s363 = sadd.s32 %s362, 1
      %s364 = scalar_select %p361, %s362, %s363
      %p367 = pneg %p361
      %p368 = scmp.eq.s32.totalorder %s32, 1
      %p369 = por %p367, %p368
      %p370 = scmp.ne.s32.totalorder %s362, %s365
      %p371 = scmp.eq.s32.totalorder %s32, 0
      %p372 = por %p370, %p371
      %p373 = scmp.ne.s32.totalorder %s362, %s365
      %p374 = scmp.eq.s32.totalorder %s37, 1
      %p375 = por %p373, %p374
      %p376 = scmp.ne.s32.totalorder %s365, %s366
      %p377 = scmp.eq.s32.totalorder %s37, 0
      %p378 = por %p376, %p377
      %p379 = scmp.ne.s32.totalorder %s365, %s366
      %p380 = scmp.eq.s32.totalorder %s38, 1
      %p381 = por %p379, %p380
      %p383 = scmp.ne.s32.totalorder %s366, %s382
      %p384 = scmp.eq.s32.totalorder %s38, 0
      %p385 = por %p383, %p384
      %p386 = scmp.le.s32.totalorder 1, %s32
      %p387 = scmp.lt.s32.totalorder %s32, 3
      %p388 = pnand %p386, %p387
      %p389 = pneg %p388
      // Predicated region
      $region9: #{tpu_custom_call.1} parent=5 // pred_check
        _
      $region10: #{tpu_custom_call.1} parent=5 // pred_check_branch
        %391 = sbr.rel (%p388) target = $region12
      $region11: #{tpu_custom_call.1} parent=5 // pred_region
        %s392 = ssub.s32 %s32, 1
        // Predicated region
        $region13: #{tpu_custom_call.1} parent=11 // pred_check
          %p393 = pneg %p91
        $region14: #{tpu_custom_call.1} parent=11 // pred_check_branch
          %395 = sbr.rel (%p393) target = $region16
        $region15: #{tpu_custom_call.1} parent=11 // pred_region
          _
        $region16: #{tpu_custom_call.1} parent=11 // pred_fallthru
          _
        // Predicated region
        $region17: #{tpu_custom_call.1} parent=11 // pred_check
          %p396 = pneg %p112
        $region18: #{tpu_custom_call.1} parent=11 // pred_check_branch
          %398 = sbr.rel (%p396) target = $region20
        $region19: #{tpu_custom_call.1} parent=11 // pred_region
          _
        $region20: #{tpu_custom_call.1} parent=11 // pred_fallthru
          _
        // Predicated region
        $region21: #{tpu_custom_call.1} parent=11 // pred_check
          %p399 = pneg %p133
        $region22: #{tpu_custom_call.1} parent=11 // pred_check_branch
          %401 = sbr.rel (%p399) target = $region24
        $region23: #{tpu_custom_call.1} parent=11 // pred_region
          _
        $region24: #{tpu_custom_call.1} parent=11 // pred_fallthru
          _
        // Predicated region
        $region25: #{tpu_custom_call.1} parent=11 // pred_check
          %p402 = pneg %p154
        $region26: #{tpu_custom_call.1} parent=11 // pred_check_branch
          %404 = sbr.rel (%p402) target = $region28
        $region27: #{tpu_custom_call.1} parent=11 // pred_region
          _
        $region28: #{tpu_custom_call.1} parent=11 // pred_fallthru
          _
        // Predicated region
        $region29: #{tpu_custom_call.1} parent=11 // pred_check
          %p405 = pneg %p175
        $region30: #{tpu_custom_call.1} parent=11 // pred_check_branch
          %407 = sbr.rel (%p405) target = $region32
        $region31: #{tpu_custom_call.1} parent=11 // pred_region
          %s409 = ssub.s32 16, 16
          %410 = vsyncadd [#allocation9], %s409
          %s412 = sshll.u32 [#allocation8], 4
          %s413 = int_to_ptr.vmem [resolvable:$true] %s412
          %415 = dma.hbm_to_vmem [thread:$0]  %s5, 16, %s413, [#allocation9]
        $region32: #{tpu_custom_call.1} parent=11 // pred_fallthru
          _
        // Predicated region
        $region33: #{tpu_custom_call.1} parent=11 // pred_check
          %p416 = pneg %p196
        $region34: #{tpu_custom_call.1} parent=11 // pred_check_branch
          %418 = sbr.rel (%p416) target = $region36
        $region35: #{tpu_custom_call.1} parent=11 // pred_region
          %s420 = ssub.s32 16, 16
          %421 = vsyncadd [#allocation9], %s420
          %s423 = sshll.u32 [#allocation10], 4
          %s424 = int_to_ptr.vmem [resolvable:$true] %s423
          %426 = dma.hbm_to_vmem [thread:$0]  %s6, 16, %s424, [#allocation9]
        $region36: #{tpu_custom_call.1} parent=11 // pred_fallthru
          _
        // Predicated region
        $region37: #{tpu_custom_call.1} parent=11 // pred_check
          %p427 = pneg %p217
        $region38: #{tpu_custom_call.1} parent=11 // pred_check_branch
          %429 = sbr.rel (%p427) target = $region40
        $region39: #{tpu_custom_call.1} parent=11 // pred_region
          _
        $region40: #{tpu_custom_call.1} parent=11 // pred_fallthru
          _
        // Predicated region
        $region41: #{tpu_custom_call.1} parent=11 // pred_check
          %p430 = pneg %p238
        $region42: #{tpu_custom_call.1} parent=11 // pred_check_branch
          %432 = sbr.rel (%p430) target = $region44
        $region43: #{tpu_custom_call.1} parent=11 // pred_region
          %s434 = ssub.s32 16, 16
          %435 = vsyncadd [#allocation12], %s434
          %s437 = sshll.u32 [#allocation11], 4
          %s438 = int_to_ptr.vmem [resolvable:$true] %s437
          %440 = dma.hbm_to_vmem [thread:$0]  %s8, 16, %s438, [#allocation12]
        $region44: #{tpu_custom_call.1} parent=11 // pred_fallthru
          _
        // Predicated region
        $region45: #{tpu_custom_call.1} parent=11 // pred_check
          %p441 = pneg %p259
        $region46: #{tpu_custom_call.1} parent=11 // pred_check_branch
          %443 = sbr.rel (%p441) target = $region48
        $region47: #{tpu_custom_call.1} parent=11 // pred_region
          _
        $region48: #{tpu_custom_call.1} parent=11 // pred_fallthru
          _
        // Predicated region
        $region49: #{tpu_custom_call.1} parent=11 // pred_check
          %p444 = pneg %p280
        $region50: #{tpu_custom_call.1} parent=11 // pred_check_branch
          %446 = sbr.rel (%p444) target = $region52
        $region51: #{tpu_custom_call.1} parent=11 // pred_region
          _
        $region52: #{tpu_custom_call.1} parent=11 // pred_fallthru
          _
        // Predicated region
        $region53: #{tpu_custom_call.1} parent=11 // pred_check
          %p447 = pneg %p301
        $region54: #{tpu_custom_call.1} parent=11 // pred_check_branch
          %449 = sbr.rel (%p447) target = $region56
        $region55: #{tpu_custom_call.1} parent=11 // pred_region
          _
        $region56: #{tpu_custom_call.1} parent=11 // pred_fallthru
          _
        // Predicated region
        $region57: #{tpu_custom_call.1} parent=11 // pred_check
          %p450 = pneg %p322
        $region58: #{tpu_custom_call.1} parent=11 // pred_check_branch
          %452 = sbr.rel (%p450) target = $region60
        $region59: #{tpu_custom_call.1} parent=11 // pred_region
          _
        $region60: #{tpu_custom_call.1} parent=11 // pred_fallthru
          _
      $region12: #{tpu_custom_call.1} parent=5 // pred_fallthru
        _
      %p453 = scmp.lt.s32.totalorder %s32, 2
      // Predicated region
      $region61: #{tpu_custom_call.1} parent=5 // pred_check
        %p454 = pneg %p453
      $region62: #{tpu_custom_call.1} parent=5 // pred_check_branch
        %456 = sbr.rel (%p454) target = $region64
      $region63: #{tpu_custom_call.1} parent=5 // pred_region
        // Predicated region
        $region65: #{tpu_custom_call.1} parent=63 // pred_check
          %p457 = pneg %p64
        $region66: #{tpu_custom_call.1} parent=63 // pred_check_branch
          %459 = sbr.rel (%p457) target = $region68
        $region67: #{tpu_custom_call.1} parent=63 // pred_region
          %s460 = sand.u32 %s54, 1
          %s461 = scalar_lea.sflag [#allocation6], %s460
          %s462 = sand.u32 %s54, 1
          %s463 = smul.addr %s462, 8
          %s464 = scalar_lea.vmem [#allocation5], %s463
          %s466 = ssub.s32 128, 128
          %467 = vsyncadd %s461, %s466
          %s468 = smul.addr %s39, 128
          %s469 = scalar_lea.hbm %s0, %s468
          %s471 = sshll.u32 %s464, 4
          %s472 = int_to_ptr.vmem [resolvable:$true] %s471
          %474 = dma.hbm_to_vmem [thread:$0]  %s469, 128, %s472, %s461
        $region68: #{tpu_custom_call.1} parent=63 // pred_fallthru
          _
      $region64: #{tpu_custom_call.1} parent=5 // pred_fallthru
        _
      %p475 = scmp.le.s32.totalorder 1, %s32
      %p476 = scmp.lt.s32.totalorder %s32, 3
      %p477 = pnand %p475, %p476
      %p478 = pneg %p477
      // Predicated region
      $region69: #{tpu_custom_call.1} parent=5 // pred_check
        _
      $region70: #{tpu_custom_call.1} parent=5 // pred_check_branch
        %480 = sbr.rel (%p477) target = $region72
      $region71: #{tpu_custom_call.1} parent=5 // pred_region
        %s481 = ssub.s32 %s32, 1
        %s482 = sand.u32 %s57, 1
        %s483 = scalar_lea.sflag [#allocation6], %s482
        %s484 = sand.u32 %s57, 1
        %s485 = smul.addr %s484, 8
        %s486 = scalar_lea.vmem [#allocation5], %s485
        // Predicated region
        $region73: #{tpu_custom_call.1} parent=71 // pred_check
          %p487 = pneg %p70
        $region74: #{tpu_custom_call.1} parent=71 // pred_check_branch
          %489 = sbr.rel (%p487) target = $region76
        $region75: #{tpu_custom_call.1} parent=71 // pred_region
          %490 = dma.done %s483, 128
        $region76: #{tpu_custom_call.1} parent=71 // pred_fallthru
          _
        // Predicated region
        $region77: #{tpu_custom_call.1} parent=71 // pred_check
          %p491 = pneg %p175
        $region78: #{tpu_custom_call.1} parent=71 // pred_check_branch
          %493 = sbr.rel (%p491) target = $region80
        $region79: #{tpu_custom_call.1} parent=71 // pred_region
          %494 = dma.done [#allocation9], 16
        $region80: #{tpu_custom_call.1} parent=71 // pred_fallthru
          _
        // Predicated region
        $region81: #{tpu_custom_call.1} parent=71 // pred_check
          %p495 = pneg %p196
        $region82: #{tpu_custom_call.1} parent=71 // pred_check_branch
          %497 = sbr.rel (%p495) target = $region84
        $region83: #{tpu_custom_call.1} parent=71 // pred_region
          %498 = dma.done [#allocation9], 16
        $region84: #{tpu_custom_call.1} parent=71 // pred_fallthru
          _
        // Predicated region
        $region85: #{tpu_custom_call.1} parent=71 // pred_check
          %p499 = pneg %p238
        $region86: #{tpu_custom_call.1} parent=71 // pred_check_branch
          %501 = sbr.rel (%p499) target = $region88
        $region87: #{tpu_custom_call.1} parent=71 // pred_region
          %502 = dma.done [#allocation12], 16
        $region88: #{tpu_custom_call.1} parent=71 // pred_fallthru
          _
        %s503 = sand.u32 %s57, 1
        %s504 = scalar_lea.sflag [#allocation6], %s503
        %s505 = sand.u32 %s57, 1
        %s506 = smul.addr %s505, 8
        %s507 = scalar_lea.vmem [#allocation5], %s506
        %p508 = pneg %p70
        %p509 = pneg %p67
        %p510 = pneg %p91
        %p511 = pneg %p88
        %p512 = pneg %p112
        %p513 = pneg %p109
        %p514 = pneg %p133
        %p515 = pneg %p130
        %p516 = pneg %p154
        %p517 = pneg %p151
        %p518 = pneg %p175
        %p519 = pneg %p172
        %p520 = pneg %p196
        %p521 = pneg %p193
        %p522 = pneg %p217
        %p523 = pneg %p214
        %p524 = pneg %p238
        %p525 = pneg %p235
        %p526 = pneg %p259
        %p527 = pneg %p256
        %p528 = pneg %p280
        %p529 = pneg %p277
        %p530 = pneg %p301
        %p531 = pneg %p298
        %p532 = pneg %p322
        %p533 = pneg %p319
        %p534 = pneg %p350
        %p535 = pneg %p347
        %s536 = sand.u32 %s337, 1
        %s537 = scalar_lea.sflag [#allocation7], %s536
        %s538 = sand.u32 %s337, 1
        %s539 = smul.addr %s538, 8
        %s540 = scalar_lea.vmem [#allocation13], %s539
        %p541 = pneg %p378
        %p542 = pneg %p375
        %s543 = sand.u32 %s365, 1
        %s544 = scalar_lea.sflag [#allocation15], %s543
        %s545 = sand.u32 %s365, 1
        %s546 = smul.addr %s545, 32
        %s547 = scalar_lea.vmem [#allocation14], %s546
        %p548 = scmp.eq.s32.totalorder %s42, 0
        // Predicated region
        $region89: #{tpu_custom_call.1} parent=71 // pred_check
          %p549 = pneg %p548
        $region90: #{tpu_custom_call.1} parent=71 // pred_check_branch
          %551 = sbr.rel (%p549) target = $region92
        $region91: #{tpu_custom_call.1} parent=71 // pred_region
          %v552 = vld [vmem:[%s486] sm:$0xff]
          %v553 = vld [vmem:[%s1] sm:$0xff]
          %v554 = vld [vmem:[%s1 + $0x8] sm:$0xff]
          %v555 = vld [vmem:[%s1 + $0x10] sm:$0xff]
          %v556 = vld [vmem:[%s1 + $0x18] sm:$0xff]
          %v557 = vld [vmem:[%s2] sm:$0x1]
          %v559 = vlaneseq
          %v560 = vshrl.u32 %v559, 7
          %v561 = vsub.s32 0, %v560
          %v562 = vrot.slane %v557, %v561
          %vm564 = vcmask 261120
          %v566 = vsel %vm564, %v552, 0
          %568 = vmatprep.subr.mxu0 0.0
          %569 = vmatpush1.msra.mxu0 %v553
          %570 = vmatprep.subr.mxu0 0.0
          %571 = vmatpush1.msra.mxu0 %v554
          %572 = vmatprep.subr.mxu0 0.0
          %573 = vmatpush1.msra.mxu0 %v555
          %574 = vmatprep.subr.mxu0 0.0
          %575 = vmatpush1.msra.mxu0 %v556
          %576 = vmatprep.subr.mxu0 0.0
          %577 = vmatpush1.msra.mxu0 0.0
          %578 = vmatprep.subr.mxu0 0.0
          %579 = vmatpush1.msra.mxu0 0.0
          %580 = vmatprep.subr.mxu0 0.0
          %581 = vmatpush1.msra.mxu0 0.0
          %582 = vmatprep.subr.mxu0 0.0
          %583 = vmatpush1.msra.mxu0 0.0
          %584 = vmatprep.subr.mxu0 0.0
          %585 = vmatpush1.msra.mxu0 0.0
          %586 = vmatprep.subr.mxu0 0.0
          %587 = vmatpush1.msra.mxu0 0.0
          %588 = vmatprep.subr.mxu0 0.0
          %589 = vmatpush1.msra.mxu0 0.0
          %590 = vmatprep.subr.mxu0 0.0
          %591 = vmatpush1.msra.mxu0 0.0
          %592 = vmatprep.subr.mxu0 0.0
          %593 = vmatpush1.msra.mxu0 0.0
          %594 = vmatprep.subr.mxu0 0.0
          %595 = vmatpush1.msra.mxu0 0.0
          %596 = vmatprep.subr.mxu0 0.0
          %597 = vmatpush1.msra.mxu0 0.0
          %598 = vmatprep.subr.mxu0 0.0
          %599 = vmatpush1.msra.mxu0 0.0
          %600 = vmatprep.subr.mxu0 0.0
          %601 = vmatpush1.msra.mxu0 0.0
          %602 = vmatprep.subr.mxu0 0.0
          %603 = vmatpush1.msra.mxu0 0.0
          %604 = vmatprep.subr.mxu0 0.0
          %605 = vmatpush1.msra.mxu0 0.0
          %606 = vmatprep.subr.mxu0 0.0
          %607 = vmatpush1.msra.mxu0 0.0
          %608 = vmatprep.subr.mxu0 0.0
          %609 = vmatpush1.msra.mxu0 0.0
          %610 = vmatprep.subr.mxu0 0.0
          %611 = vmatpush1.msra.mxu0 0.0
          %612 = vmatprep.subr.mxu0 0.0
          %613 = vmatpush1.msra.mxu0 0.0
          %614 = vmatprep.subr.mxu0 0.0
          %615 = vmatpush1.msra.mxu0 0.0
          %616 = vmatprep.subr.mxu0 0.0
          %617 = vmatpush1.msra.mxu0 0.0
          %618 = vmatprep.subr.mxu0 0.0
          %619 = vmatpush1.msra.mxu0 0.0
          %620 = vmatprep.subr.mxu0 0.0
          %621 = vmatpush1.msra.mxu0 0.0
          %622 = vmatprep.subr.mxu0 0.0
          %623 = vmatpush1.msra.mxu0 0.0
          %624 = vmatprep.subr.mxu0 0.0
          %625 = vmatpush1.msra.mxu0 0.0
          %626 = vmatprep.subr.mxu0 0.0
          %627 = vmatpush1.msra.mxu0 0.0
          %628 = vmatprep.subr.mxu0 0.0
          %629 = vmatpush1.msra.mxu0 0.0
          %630 = vmatprep.subr.mxu0 0.0
          %631 = vmatpush1.msra.mxu0 0.0
          %632 = vmatprep.mubr.f32.mxu0 0.0
          %633 = vmatmul.mubr.f32.gmra.mrb[0].mxu0 %v566
          %v634 = vpop.f32.mrb[0].mxu0
          %v635 = vadd.f32 %v562, %v634
          %v636 = vpop.f32.mrb[0].mxu0
          %637 = vdwg.mxu0
          %639 = vrot.lane.b32.xlu0 %v635, 120
          %v640 = vpop.permute.xlu0 %639
          %642 = vrot.lane.b32.xlu0 %v635, 112
          %v643 = vpop.permute.xlu0 %642
          %645 = vrot.lane.b32.xlu0 %v635, 104
          %v646 = vpop.permute.xlu0 %645
          %v648 = vcombine.low %v635, %v643
          %v649 = vcombine.high %v635, %v643
          %v651 = vunpack.c.l.s4 1983009808
          %v652 = vunpack.c.0.s8 %v651
          %v653 = vlaneseq
          %v654 = vshrl.u32 %v653, 7
          %v655 = vsub.s32 %v652, %v654
          %v656 = vrot.slane %v648, %v655
          %v658 = vunpack.c.l.s4 1983009808
          %v659 = vunpack.c.0.s8 %v658
          %v660 = vlaneseq
          %v661 = vshrl.u32 %v660, 7
          %v662 = vsub.s32 %v659, %v661
          %v663 = vrot.slane %v649, %v662
          %v664 = vcombine.low %v640, %v646
          %v665 = vcombine.high %v640, %v646
          %v667 = vunpack.c.l.s4 1983009808
          %v668 = vunpack.c.0.s8 %v667
          %v669 = vlaneseq
          %v670 = vshrl.u32 %v669, 7
          %v671 = vsub.s32 %v668, %v670
          %v672 = vrot.slane %v664, %v671
          %v674 = vunpack.c.l.s4 1983009808
          %v675 = vunpack.c.0.s8 %v674
          %v676 = vlaneseq
          %v677 = vshrl.u32 %v676, 7
          %v678 = vsub.s32 %v675, %v677
          %v679 = vrot.slane %v665, %v678
          %v680 = vcombine.low %v656, %v672
          %v681 = vcombine.high %v656, %v672
          %v683 = vunpack.c.l.s4 1934713408
          %v684 = vunpack.c.0.s8 %v683
          %v685 = vlaneseq
          %v686 = vshrl.u32 %v685, 7
          %v687 = vsub.s32 %v684, %v686
          %v688 = vrot.slane %v680, %v687
          %v690 = vunpack.c.l.s4 1934713408
          %v691 = vunpack.c.0.s8 %v690
          %v692 = vlaneseq
          %v693 = vshrl.u32 %v692, 7
          %v694 = vsub.s32 %v691, %v693
          %v695 = vrot.slane %v681, %v694
          %v696 = vcombine.low %v663, %v679
          %v697 = vcombine.high %v663, %v679
          %v699 = vunpack.c.l.s4 1934713408
          %v700 = vunpack.c.0.s8 %v699
          %v701 = vlaneseq
          %v702 = vshrl.u32 %v701, 7
          %v703 = vsub.s32 %v700, %v702
          %v704 = vrot.slane %v696, %v703
          %v706 = vunpack.c.l.s4 1934713408
          %v707 = vunpack.c.0.s8 %v706
          %v708 = vlaneseq
          %v709 = vshrl.u32 %v708, 7
          %v710 = vsub.s32 %v707, %v709
          %v711 = vrot.slane %v697, %v710
          %v712 = vcombine.high %v688, 0.0
          %v713 = vcombine.high %v695, 0.0
          %v714 = vcombine.high %v704, 0.0
          %v715 = vcombine.high %v711, 0.0
          %v716 = vcombine.low %v688, %v695
          %v718 = vunpack.c.l.s4 1983009808
          %v719 = vunpack.c.0.s8 %v718
          %v720 = vlaneseq
          %v721 = vshrl.u32 %v720, 7
          %v722 = vsub.s32 %v719, %v721
          %v723 = vrot.slane %v716, %v722
          %v724 = vcombine.low %v712, %v713
          %v726 = vunpack.c.l.s4 1983009808
          %v727 = vunpack.c.0.s8 %v726
          %v728 = vlaneseq
          %v729 = vshrl.u32 %v728, 7
          %v730 = vsub.s32 %v727, %v729
          %v731 = vrot.slane %v724, %v730
          %v732 = vcombine.low %v704, %v711
          %v734 = vunpack.c.l.s4 1983009808
          %v735 = vunpack.c.0.s8 %v734
          %v736 = vlaneseq
          %v737 = vshrl.u32 %v736, 7
          %v738 = vsub.s32 %v735, %v737
          %v739 = vrot.slane %v732, %v738
          %v740 = vcombine.low %v714, %v715
          %v742 = vunpack.c.l.s4 1983009808
          %v743 = vunpack.c.0.s8 %v742
          %v744 = vlaneseq
          %v745 = vshrl.u32 %v744, 7
          %v746 = vsub.s32 %v743, %v745
          %v747 = vrot.slane %v740, %v746
          %v748 = vcombine.low %v723, %v731
          %v749 = vcombine.high %v723, %v731
          %v751 = vunpack.c.l.s4 1934713408
          %v752 = vunpack.c.0.s8 %v751
          %v753 = vlaneseq
          %v754 = vshrl.u32 %v753, 7
          %v755 = vsub.s32 %v752, %v754
          %v756 = vrot.slane %v748, %v755
          %v758 = vunpack.c.l.s4 1934713408
          %v759 = vunpack.c.0.s8 %v758
          %v760 = vlaneseq
          %v761 = vshrl.u32 %v760, 7
          %v762 = vsub.s32 %v759, %v761
          %v763 = vrot.slane %v749, %v762
          %v764 = vcombine.low %v739, %v747
          %v765 = vcombine.high %v739, %v747
          %v767 = vunpack.c.l.s4 1934713408
          %v768 = vunpack.c.0.s8 %v767
          %v769 = vlaneseq
          %v770 = vshrl.u32 %v769, 7
          %v771 = vsub.s32 %v768, %v770
          %v772 = vrot.slane %v764, %v771
          %v774 = vunpack.c.l.s4 1934713408
          %v775 = vunpack.c.0.s8 %v774
          %v776 = vlaneseq
          %v777 = vshrl.u32 %v776, 7
          %v778 = vsub.s32 %v775, %v777
          %v779 = vrot.slane %v765, %v778
          %v780 = vcombine.low %v756, %v772
          %v781 = vcombine.high %v756, %v772
          %v782 = vcombine.low %v763, %v779
          %v783 = vcombine.high %v763, %v779
          %vm784 = vcmask 64512
          %785 = vst.msk [vmem:[#allocation2] sm:$0xff] %vm784, %v780
          %786 = vst.msk [vmem:[#allocation2 + $0x8] sm:$0xff] %vm784, %v781
          %787 = vst.msk [vmem:[#allocation2 + $0x10] sm:$0xff] %vm784, %v782
          %788 = vst.msk [vmem:[#allocation2 + $0x18] sm:$0xff] %vm784, %v783
          %789 = vrot.lane.b32.xlu0 %v635, 96
          %v790 = vpop.permute.xlu0 %789
          %791 = vrot.lane.b32.xlu0 %v640, 96
          %v792 = vpop.permute.xlu0 %791
          %793 = vrot.lane.b32.xlu0 %v643, 96
          %v794 = vpop.permute.xlu0 %793
          %795 = vrot.lane.b32.xlu0 %v646, 96
          %v796 = vpop.permute.xlu0 %795
          %v801 = vcombine.low %v790, %v794
          %v802 = vcombine.high %v790, %v794
          %v804 = vunpack.c.l.s4 1983009808
          %v805 = vunpack.c.0.s8 %v804
          %v806 = vlaneseq
          %v807 = vshrl.u32 %v806, 7
          %v808 = vsub.s32 %v805, %v807
          %v809 = vrot.slane %v801, %v808
          %v811 = vunpack.c.l.s4 1983009808
          %v812 = vunpack.c.0.s8 %v811
          %v813 = vlaneseq
          %v814 = vshrl.u32 %v813, 7
          %v815 = vsub.s32 %v812, %v814
          %v816 = vrot.slane %v802, %v815
          %v817 = vcombine.low %v792, %v796
          %v818 = vcombine.high %v792, %v796
          %v820 = vunpack.c.l.s4 1983009808
          %v821 = vunpack.c.0.s8 %v820
          %v822 = vlaneseq
          %v823 = vshrl.u32 %v822, 7
          %v824 = vsub.s32 %v821, %v823
          %v825 = vrot.slane %v817, %v824
          %v827 = vunpack.c.l.s4 1983009808
          %v828 = vunpack.c.0.s8 %v827
          %v829 = vlaneseq
          %v830 = vshrl.u32 %v829, 7
          %v831 = vsub.s32 %v828, %v830
          %v832 = vrot.slane %v818, %v831
          %v833 = vcombine.low %v809, %v825
          %v834 = vcombine.high %v809, %v825
          %v836 = vunpack.c.l.s4 1934713408
          %v837 = vunpack.c.0.s8 %v836
          %v838 = vlaneseq
          %v839 = vshrl.u32 %v838, 7
          %v840 = vsub.s32 %v837, %v839
          %v841 = vrot.slane %v833, %v840
          %v843 = vunpack.c.l.s4 1934713408
          %v844 = vunpack.c.0.s8 %v843
          %v845 = vlaneseq
          %v846 = vshrl.u32 %v845, 7
          %v847 = vsub.s32 %v844, %v846
          %v848 = vrot.slane %v834, %v847
          %v849 = vcombine.low %v816, %v832
          %v850 = vcombine.high %v816, %v832
          %v852 = vunpack.c.l.s4 1934713408
          %v853 = vunpack.c.0.s8 %v852
          %v854 = vlaneseq
          %v855 = vshrl.u32 %v854, 7
          %v856 = vsub.s32 %v853, %v855
          %v857 = vrot.slane %v849, %v856
          %v859 = vunpack.c.l.s4 1934713408
          %v860 = vunpack.c.0.s8 %v859
          %v861 = vlaneseq
          %v862 = vshrl.u32 %v861, 7
          %v863 = vsub.s32 %v860, %v862
          %v864 = vrot.slane %v850, %v863
          %v865 = vcombine.high %v841, 0.0
          %v866 = vcombine.high %v848, 0.0
          %v867 = vcombine.high %v857, 0.0
          %v868 = vcombine.high %v864, 0.0
          %v869 = vcombine.low %v841, %v848
          %v871 = vunpack.c.l.s4 1983009808
          %v872 = vunpack.c.0.s8 %v871
          %v873 = vlaneseq
          %v874 = vshrl.u32 %v873, 7
          %v875 = vsub.s32 %v872, %v874
          %v876 = vrot.slane %v869, %v875
          %v877 = vcombine.low %v865, %v866
          %v879 = vunpack.c.l.s4 1983009808
          %v880 = vunpack.c.0.s8 %v879
          %v881 = vlaneseq
          %v882 = vshrl.u32 %v881, 7
          %v883 = vsub.s32 %v880, %v882
          %v884 = vrot.slane %v877, %v883
          %v885 = vcombine.low %v857, %v864
          %v887 = vunpack.c.l.s4 1983009808
          %v888 = vunpack.c.0.s8 %v887
          %v889 = vlaneseq
          %v890 = vshrl.u32 %v889, 7
          %v891 = vsub.s32 %v888, %v890
          %v892 = vrot.slane %v885, %v891
          %v893 = vcombine.low %v867, %v868
          %v895 = vunpack.c.l.s4 1983009808
          %v896 = vunpack.c.0.s8 %v895
          %v897 = vlaneseq
          %v898 = vshrl.u32 %v897, 7
          %v899 = vsub.s32 %v896, %v898
          %v900 = vrot.slane %v893, %v899
          %v901 = vcombine.low %v876, %v884
          %v902 = vcombine.high %v876, %v884
          %v904 = vunpack.c.l.s4 1934713408
          %v905 = vunpack.c.0.s8 %v904
          %v906 = vlaneseq
          %v907 = vshrl.u32 %v906, 7
          %v908 = vsub.s32 %v905, %v907
          %v909 = vrot.slane %v901, %v908
          %v911 = vunpack.c.l.s4 1934713408
          %v912 = vunpack.c.0.s8 %v911
          %v913 = vlaneseq
          %v914 = vshrl.u32 %v913, 7
          %v915 = vsub.s32 %v912, %v914
          %v916 = vrot.slane %v902, %v915
          %v917 = vcombine.low %v892, %v900
          %v918 = vcombine.high %v892, %v900
          %v920 = vunpack.c.l.s4 1934713408
          %v921 = vunpack.c.0.s8 %v920
          %v922 = vlaneseq
          %v923 = vshrl.u32 %v922, 7
          %v924 = vsub.s32 %v921, %v923
          %v925 = vrot.slane %v917, %v924
          %v927 = vunpack.c.l.s4 1934713408
          %v928 = vunpack.c.0.s8 %v927
          %v929 = vlaneseq
          %v930 = vshrl.u32 %v929, 7
          %v931 = vsub.s32 %v928, %v930
          %v932 = vrot.slane %v918, %v931
          %v933 = vcombine.low %v909, %v925
          %v934 = vcombine.high %v909, %v925
          %v935 = vcombine.low %v916, %v932
          %v936 = vcombine.high %v916, %v932
          %937 = vst.msk [vmem:[#allocation3] sm:$0xff] %vm784, %v933
          %938 = vst.msk [vmem:[#allocation3 + $0x8] sm:$0xff] %vm784, %v934
          %939 = vst.msk [vmem:[#allocation3 + $0x10] sm:$0xff] %vm784, %v935
          %940 = vst.msk [vmem:[#allocation3 + $0x18] sm:$0xff] %vm784, %v936
          %941 = vrot.lane.b32.xlu0 %v635, 64
          %v942 = vpop.permute.xlu0 %941
          %943 = vrot.lane.b32.xlu0 %v640, 64
          %v944 = vpop.permute.xlu0 %943
          %945 = vrot.lane.b32.xlu0 %v643, 64
          %v946 = vpop.permute.xlu0 %945
          %947 = vrot.lane.b32.xlu0 %v646, 64
          %v948 = vpop.permute.xlu0 %947
          %v953 = vcombine.low %v942, %v946
          %v954 = vcombine.high %v942, %v946
          %v956 = vunpack.c.l.s4 1983009808
          %v957 = vunpack.c.0.s8 %v956
          %v958 = vlaneseq
          %v959 = vshrl.u32 %v958, 7
          %v960 = vsub.s32 %v957, %v959
          %v961 = vrot.slane %v953, %v960
          %v963 = vunpack.c.l.s4 1983009808
          %v964 = vunpack.c.0.s8 %v963
          %v965 = vlaneseq
          %v966 = vshrl.u32 %v965, 7
          %v967 = vsub.s32 %v964, %v966
          %v968 = vrot.slane %v954, %v967
          %v969 = vcombine.low %v944, %v948
          %v970 = vcombine.high %v944, %v948
          %v972 = vunpack.c.l.s4 1983009808
          %v973 = vunpack.c.0.s8 %v972
          %v974 = vlaneseq
          %v975 = vshrl.u32 %v974, 7
          %v976 = vsub.s32 %v973, %v975
          %v977 = vrot.slane %v969, %v976
          %v979 = vunpack.c.l.s4 1983009808
          %v980 = vunpack.c.0.s8 %v979
          %v981 = vlaneseq
          %v982 = vshrl.u32 %v981, 7
          %v983 = vsub.s32 %v980, %v982
          %v984 = vrot.slane %v970, %v983
          %v985 = vcombine.low %v961, %v977
          %v986 = vcombine.high %v961, %v977
          %v988 = vunpack.c.l.s4 1934713408
          %v989 = vunpack.c.0.s8 %v988
          %v990 = vlaneseq
          %v991 = vshrl.u32 %v990, 7
          %v992 = vsub.s32 %v989, %v991
          %v993 = vrot.slane %v985, %v992
          %v995 = vunpack.c.l.s4 1934713408
          %v996 = vunpack.c.0.s8 %v995
          %v997 = vlaneseq
          %v998 = vshrl.u32 %v997, 7
          %v999 = vsub.s32 %v996, %v998
          %v1000 = vrot.slane %v986, %v999
          %v1001 = vcombine.low %v968, %v984
          %v1002 = vcombine.high %v968, %v984
          %v1004 = vunpack.c.l.s4 1934713408
          %v1005 = vunpack.c.0.s8 %v1004
          %v1006 = vlaneseq
          %v1007 = vshrl.u32 %v1006, 7
          %v1008 = vsub.s32 %v1005, %v1007
          %v1009 = vrot.slane %v1001, %v1008
          %v1011 = vunpack.c.l.s4 1934713408
          %v1012 = vunpack.c.0.s8 %v1011
          %v1013 = vlaneseq
          %v1014 = vshrl.u32 %v1013, 7
          %v1015 = vsub.s32 %v1012, %v1014
          %v1016 = vrot.slane %v1002, %v1015
          %v1017 = vcombine.high %v993, 0.0
          %v1018 = vcombine.high %v1000, 0.0
          %v1019 = vcombine.high %v1009, 0.0
          %v1020 = vcombine.high %v1016, 0.0
          %v1021 = vcombine.low %v993, %v1000
          %v1023 = vunpack.c.l.s4 1983009808
          %v1024 = vunpack.c.0.s8 %v1023
          %v1025 = vlaneseq
          %v1026 = vshrl.u32 %v1025, 7
          %v1027 = vsub.s32 %v1024, %v1026
          %v1028 = vrot.slane %v1021, %v1027
          %v1029 = vcombine.low %v1017, %v1018
          %v1031 = vunpack.c.l.s4 1983009808
          %v1032 = vunpack.c.0.s8 %v1031
          %v1033 = vlaneseq
          %v1034 = vshrl.u32 %v1033, 7
          %v1035 = vsub.s32 %v1032, %v1034
          %v1036 = vrot.slane %v1029, %v1035
          %v1037 = vcombine.low %v1009, %v1016
          %v1039 = vunpack.c.l.s4 1983009808
          %v1040 = vunpack.c.0.s8 %v1039
          %v1041 = vlaneseq
          %v1042 = vshrl.u32 %v1041, 7
          %v1043 = vsub.s32 %v1040, %v1042
          %v1044 = vrot.slane %v1037, %v1043
          %v1045 = vcombine.low %v1019, %v1020
          %v1047 = vunpack.c.l.s4 1983009808
          %v1048 = vunpack.c.0.s8 %v1047
          %v1049 = vlaneseq
          %v1050 = vshrl.u32 %v1049, 7
          %v1051 = vsub.s32 %v1048, %v1050
          %v1052 = vrot.slane %v1045, %v1051
          %v1053 = vcombine.low %v1028, %v1036
          %v1054 = vcombine.high %v1028, %v1036
          %v1056 = vunpack.c.l.s4 1934713408
          %v1057 = vunpack.c.0.s8 %v1056
          %v1058 = vlaneseq
          %v1059 = vshrl.u32 %v1058, 7
          %v1060 = vsub.s32 %v1057, %v1059
          %v1061 = vrot.slane %v1053, %v1060
          %v1063 = vunpack.c.l.s4 1934713408
          %v1064 = vunpack.c.0.s8 %v1063
          %v1065 = vlaneseq
          %v1066 = vshrl.u32 %v1065, 7
          %v1067 = vsub.s32 %v1064, %v1066
          %v1068 = vrot.slane %v1054, %v1067
          %v1069 = vcombine.low %v1044, %v1052
          %v1070 = vcombine.high %v1044, %v1052
          %v1072 = vunpack.c.l.s4 1934713408
          %v1073 = vunpack.c.0.s8 %v1072
          %v1074 = vlaneseq
          %v1075 = vshrl.u32 %v1074, 7
          %v1076 = vsub.s32 %v1073, %v1075
          %v1077 = vrot.slane %v1069, %v1076
          %v1079 = vunpack.c.l.s4 1934713408
          %v1080 = vunpack.c.0.s8 %v1079
          %v1081 = vlaneseq
          %v1082 = vshrl.u32 %v1081, 7
          %v1083 = vsub.s32 %v1080, %v1082
          %v1084 = vrot.slane %v1070, %v1083
          %v1085 = vcombine.low %v1061, %v1077
          %v1086 = vcombine.high %v1061, %v1077
          %v1087 = vcombine.low %v1068, %v1084
          %v1088 = vcombine.high %v1068, %v1084
          %1089 = vst.msk [vmem:[#allocation4] sm:$0xff] %vm784, %v1085
          %1090 = vst.msk [vmem:[#allocation4 + $0x8] sm:$0xff] %vm784, %v1086
          %1091 = vst.msk [vmem:[#allocation4 + $0x10] sm:$0xff] %vm784, %v1087
          %1092 = vst.msk [vmem:[#allocation4 + $0x18] sm:$0xff] %vm784, %v1088
        $region92: #{tpu_custom_call.1} parent=71 // pred_fallthru
          _
        %s1093 = smul.u32 %s42, 8
        %s1094 = scalar_lea.vmem [#allocation2], %s1093
        %v1095 = vld [vmem:[%s1094] sm:$0xff]
        %v1096 = vld [vmem:[%s1094 + $0x8] sm:$0xff]
        %v1097 = vld [vmem:[%s1094 + $0x10] sm:$0xff]
        %v1098 = vld [vmem:[%s1094 + $0x18] sm:$0xff]
        %v1099 = vld [vmem:[#allocation3] sm:$0xff]
        %v1100 = vld [vmem:[#allocation3 + $0x8] sm:$0xff]
        %v1101 = vld [vmem:[#allocation3 + $0x10] sm:$0xff]
        %v1102 = vld [vmem:[#allocation3 + $0x18] sm:$0xff]
        %vm1103 = vcmask 64512
        %v1105 = vsel %vm1103, %v1095, 0
        %v1108 = vsel %vm1103, %v1099, 0
        %1110 = vmatprep.subr.mxu0 0.0
        %1111 = vmatpush1.xpose.msra.mxu0 %v1108
        %1112 = vmatprep.subr.mxu0 0.0
        %1113 = vmatpush1.xpose.msra.mxu0 0.0
        %1114 = vmatprep.subr.mxu0 0.0
        %1115 = vmatpush1.xpose.msra.mxu0 0.0
        %1116 = vmatprep.subr.mxu0 0.0
        %1117 = vmatpush1.xpose.msra.mxu0 0.0
        %1118 = vmatprep.subr.mxu0 0.0
        %1119 = vmatpush1.xpose.msra.mxu0 0.0
        %1120 = vmatprep.subr.mxu0 0.0
        %1121 = vmatpush1.xpose.msra.mxu0 0.0
        %1122 = vmatprep.subr.mxu0 0.0
        %1123 = vmatpush1.xpose.msra.mxu0 0.0
        %1124 = vmatprep.subr.mxu0 0.0
        %1125 = vmatpush1.xpose.msra.mxu0 0.0
        %1126 = vmatprep.subr.mxu0 0.0
        %1127 = vmatpush1.xpose.msra.mxu0 0.0
        %1128 = vmatprep.subr.mxu0 0.0
        %1129 = vmatpush1.xpose.msra.mxu0 0.0
        %1130 = vmatprep.subr.mxu0 0.0
        %1131 = vmatpush1.xpose.msra.mxu0 0.0
        %1132 = vmatprep.subr.mxu0 0.0
        %1133 = vmatpush1.xpose.msra.mxu0 0.0
        %1134 = vmatprep.subr.mxu0 0.0
        %1135 = vmatpush1.xpose.msra.mxu0 0.0
        %1136 = vmatprep.subr.mxu0 0.0
        %1137 = vmatpush1.xpose.msra.mxu0 0.0
        %1138 = vmatprep.subr.mxu0 0.0
        %1139 = vmatpush1.xpose.msra.mxu0 0.0
        %1140 = vmatprep.subr.mxu0 0.0
        %1141 = vmatpush1.xpose.msra.mxu0 0.0
        %1142 = vmatprep.subr.mxu0 0.0
        %1143 = vmatpush1.xpose.msra.mxu0 0.0
        %1144 = vmatprep.subr.mxu0 0.0
        %1145 = vmatpush1.xpose.msra.mxu0 0.0
        %1146 = vmatprep.subr.mxu0 0.0
        %1147 = vmatpush1.xpose.msra.mxu0 0.0
        %1148 = vmatprep.subr.mxu0 0.0
        %1149 = vmatpush1.xpose.msra.mxu0 0.0
        %1150 = vmatprep.subr.mxu0 0.0
        %1151 = vmatpush1.xpose.msra.mxu0 0.0
        %1152 = vmatprep.subr.mxu0 0.0
        %1153 = vmatpush1.xpose.msra.mxu0 0.0
        %1154 = vmatprep.subr.mxu0 0.0
        %1155 = vmatpush1.xpose.msra.mxu0 0.0
        %1156 = vmatprep.subr.mxu0 0.0
        %1157 = vmatpush1.xpose.msra.mxu0 0.0
        %1158 = vmatprep.subr.mxu0 0.0
        %1159 = vmatpush1.xpose.msra.mxu0 0.0
        %1160 = vmatprep.subr.mxu0 0.0
        %1161 = vmatpush1.xpose.msra.mxu0 0.0
        %1162 = vmatprep.subr.mxu0 0.0
        %1163 = vmatpush1.xpose.msra.mxu0 0.0
        %1164 = vmatprep.subr.mxu0 0.0
        %1165 = vmatpush1.xpose.msra.mxu0 0.0
        %1166 = vmatprep.subr.mxu0 0.0
        %1167 = vmatpush1.xpose.msra.mxu0 0.0
        %1168 = vmatprep.subr.mxu0 0.0
        %1169 = vmatpush1.xpose.msra.mxu0 0.0
        %1170 = vmatprep.subr.mxu0 0.0
        %1171 = vmatpush1.xpose.msra.mxu0 0.0
        %1172 = vmatprep.subr.mxu0 0.0
        %1173 = vmatpush1.xpose.msra.mxu0 0.0
        %1174 = vmatprep.mubr.f32.mxu0 0.0
        %1175 = vmatmul.mubr.f32.gmra.mrb[0].mxu0 %v1105
        %v1176 = vpop.f32.mrb[0].mxu0
        %v1177 = vadd.f32 0.0, %v1176
        %v1178 = vpop.f32.mrb[0].mxu0
        %1179 = vdwg.mxu0
        %v1181 = vsel %vm1103, %v1096, 0
        %v1184 = vsel %vm1103, %v1100, 0
        %1186 = vmatprep.subr.mxu0 0.0
        %1187 = vmatpush1.xpose.msra.mxu0 %v1184
        %1188 = vmatprep.subr.mxu0 0.0
        %1189 = vmatpush1.xpose.msra.mxu0 0.0
        %1190 = vmatprep.subr.mxu0 0.0
        %1191 = vmatpush1.xpose.msra.mxu0 0.0
        %1192 = vmatprep.subr.mxu0 0.0
        %1193 = vmatpush1.xpose.msra.mxu0 0.0
        %1194 = vmatprep.subr.mxu0 0.0
        %1195 = vmatpush1.xpose.msra.mxu0 0.0
        %1196 = vmatprep.subr.mxu0 0.0
        %1197 = vmatpush1.xpose.msra.mxu0 0.0
        %1198 = vmatprep.subr.mxu0 0.0
        %1199 = vmatpush1.xpose.msra.mxu0 0.0
        %1200 = vmatprep.subr.mxu0 0.0
        %1201 = vmatpush1.xpose.msra.mxu0 0.0
        %1202 = vmatprep.subr.mxu0 0.0
        %1203 = vmatpush1.xpose.msra.mxu0 0.0
        %1204 = vmatprep.subr.mxu0 0.0
        %1205 = vmatpush1.xpose.msra.mxu0 0.0
        %1206 = vmatprep.subr.mxu0 0.0
        %1207 = vmatpush1.xpose.msra.mxu0 0.0
        %1208 = vmatprep.subr.mxu0 0.0
        %1209 = vmatpush1.xpose.msra.mxu0 0.0
        %1210 = vmatprep.subr.mxu0 0.0
        %1211 = vmatpush1.xpose.msra.mxu0 0.0
        %1212 = vmatprep.subr.mxu0 0.0
        %1213 = vmatpush1.xpose.msra.mxu0 0.0
        %1214 = vmatprep.subr.mxu0 0.0
        %1215 = vmatpush1.xpose.msra.mxu0 0.0
        %1216 = vmatprep.subr.mxu0 0.0
        %1217 = vmatpush1.xpose.msra.mxu0 0.0
        %1218 = vmatprep.subr.mxu0 0.0
        %1219 = vmatpush1.xpose.msra.mxu0 0.0
        %1220 = vmatprep.subr.mxu0 0.0
        %1221 = vmatpush1.xpose.msra.mxu0 0.0
        %1222 = vmatprep.subr.mxu0 0.0
        %1223 = vmatpush1.xpose.msra.mxu0 0.0
        %1224 = vmatprep.subr.mxu0 0.0
        %1225 = vmatpush1.xpose.msra.mxu0 0.0
        %1226 = vmatprep.subr.mxu0 0.0
        %1227 = vmatpush1.xpose.msra.mxu0 0.0
        %1228 = vmatprep.subr.mxu0 0.0
        %1229 = vmatpush1.xpose.msra.mxu0 0.0
        %1230 = vmatprep.subr.mxu0 0.0
        %1231 = vmatpush1.xpose.msra.mxu0 0.0
        %1232 = vmatprep.subr.mxu0 0.0
        %1233 = vmatpush1.xpose.msra.mxu0 0.0
        %1234 = vmatprep.subr.mxu0 0.0
        %1235 = vmatpush1.xpose.msra.mxu0 0.0
        %1236 = vmatprep.subr.mxu0 0.0
        %1237 = vmatpush1.xpose.msra.mxu0 0.0
        %1238 = vmatprep.subr.mxu0 0.0
        %1239 = vmatpush1.xpose.msra.mxu0 0.0
        %1240 = vmatprep.subr.mxu0 0.0
        %1241 = vmatpush1.xpose.msra.mxu0 0.0
        %1242 = vmatprep.subr.mxu0 0.0
        %1243 = vmatpush1.xpose.msra.mxu0 0.0
        %1244 = vmatprep.subr.mxu0 0.0
        %1245 = vmatpush1.xpose.msra.mxu0 0.0
        %1246 = vmatprep.subr.mxu0 0.0
        %1247 = vmatpush1.xpose.msra.mxu0 0.0
        %1248 = vmatprep.subr.mxu0 0.0
        %1249 = vmatpush1.xpose.msra.mxu0 0.0
        %1250 = vmatprep.mubr.f32.mxu0 0.0
        %1251 = vmatmul.mubr.f32.gmra.mrb[0].mxu0 %v1181
        %v1252 = vpop.f32.mrb[0].mxu0
        %v1253 = vadd.f32 0.0, %v1252
        %v1254 = vpop.f32.mrb[0].mxu0
        %1255 = vdwg.mxu0
        %v1257 = vsel %vm1103, %v1097, 0
        %v1260 = vsel %vm1103, %v1101, 0
        %1262 = vmatprep.subr.mxu0 0.0
        %1263 = vmatpush1.xpose.msra.mxu0 %v1260
        %1264 = vmatprep.subr.mxu0 0.0
        %1265 = vmatpush1.xpose.msra.mxu0 0.0
        %1266 = vmatprep.subr.mxu0 0.0
        %1267 = vmatpush1.xpose.msra.mxu0 0.0
        %1268 = vmatprep.subr.mxu0 0.0
        %1269 = vmatpush1.xpose.msra.mxu0 0.0
        %1270 = vmatprep.subr.mxu0 0.0
        %1271 = vmatpush1.xpose.msra.mxu0 0.0
        %1272 = vmatprep.subr.mxu0 0.0
        %1273 = vmatpush1.xpose.msra.mxu0 0.0
        %1274 = vmatprep.subr.mxu0 0.0
        %1275 = vmatpush1.xpose.msra.mxu0 0.0
        %1276 = vmatprep.subr.mxu0 0.0
        %1277 = vmatpush1.xpose.msra.mxu0 0.0
        %1278 = vmatprep.subr.mxu0 0.0
        %1279 = vmatpush1.xpose.msra.mxu0 0.0
        %1280 = vmatprep.subr.mxu0 0.0
        %1281 = vmatpush1.xpose.msra.mxu0 0.0
        %1282 = vmatprep.subr.mxu0 0.0
        %1283 = vmatpush1.xpose.msra.mxu0 0.0
        %1284 = vmatprep.subr.mxu0 0.0
        %1285 = vmatpush1.xpose.msra.mxu0 0.0
        %1286 = vmatprep.subr.mxu0 0.0
        %1287 = vmatpush1.xpose.msra.mxu0 0.0
        %1288 = vmatprep.subr.mxu0 0.0
        %1289 = vmatpush1.xpose.msra.mxu0 0.0
        %1290 = vmatprep.subr.mxu0 0.0
        %1291 = vmatpush1.xpose.msra.mxu0 0.0
        %1292 = vmatprep.subr.mxu0 0.0
        %1293 = vmatpush1.xpose.msra.mxu0 0.0
        %1294 = vmatprep.subr.mxu0 0.0
        %1295 = vmatpush1.xpose.msra.mxu0 0.0
        %1296 = vmatprep.subr.mxu0 0.0
        %1297 = vmatpush1.xpose.msra.mxu0 0.0
        %1298 = vmatprep.subr.mxu0 0.0
        %1299 = vmatpush1.xpose.msra.mxu0 0.0
        %1300 = vmatprep.subr.mxu0 0.0
        %1301 = vmatpush1.xpose.msra.mxu0 0.0
        %1302 = vmatprep.subr.mxu0 0.0
        %1303 = vmatpush1.xpose.msra.mxu0 0.0
        %1304 = vmatprep.subr.mxu0 0.0
        %1305 = vmatpush1.xpose.msra.mxu0 0.0
        %1306 = vmatprep.subr.mxu0 0.0
        %1307 = vmatpush1.xpose.msra.mxu0 0.0
        %1308 = vmatprep.subr.mxu0 0.0
        %1309 = vmatpush1.xpose.msra.mxu0 0.0
        %1310 = vmatprep.subr.mxu0 0.0
        %1311 = vmatpush1.xpose.msra.mxu0 0.0
        %1312 = vmatprep.subr.mxu0 0.0
        %1313 = vmatpush1.xpose.msra.mxu0 0.0
        %1314 = vmatprep.subr.mxu0 0.0
        %1315 = vmatpush1.xpose.msra.mxu0 0.0
        %1316 = vmatprep.subr.mxu0 0.0
        %1317 = vmatpush1.xpose.msra.mxu0 0.0
        %1318 = vmatprep.subr.mxu0 0.0
        %1319 = vmatpush1.xpose.msra.mxu0 0.0
        %1320 = vmatprep.subr.mxu0 0.0
        %1321 = vmatpush1.xpose.msra.mxu0 0.0
        %1322 = vmatprep.subr.mxu0 0.0
        %1323 = vmatpush1.xpose.msra.mxu0 0.0
        %1324 = vmatprep.subr.mxu0 0.0
        %1325 = vmatpush1.xpose.msra.mxu0 0.0
        %1326 = vmatprep.mubr.f32.mxu0 0.0
        %1327 = vmatmul.mubr.f32.gmra.mrb[0].mxu0 %v1257
        %v1328 = vpop.f32.mrb[0].mxu0
        %v1329 = vadd.f32 0.0, %v1328
        %v1330 = vpop.f32.mrb[0].mxu0
        %1331 = vdwg.mxu0
        %v1333 = vsel %vm1103, %v1098, 0
        %v1336 = vsel %vm1103, %v1102, 0
        %1338 = vmatprep.subr.mxu0 0.0
        %1339 = vmatpush1.xpose.msra.mxu0 %v1336
        %1340 = vmatprep.subr.mxu0 0.0
        %1341 = vmatpush1.xpose.msra.mxu0 0.0
        %1342 = vmatprep.subr.mxu0 0.0
        %1343 = vmatpush1.xpose.msra.mxu0 0.0
        %1344 = vmatprep.subr.mxu0 0.0
        %1345 = vmatpush1.xpose.msra.mxu0 0.0
        %1346 = vmatprep.subr.mxu0 0.0
        %1347 = vmatpush1.xpose.msra.mxu0 0.0
        %1348 = vmatprep.subr.mxu0 0.0
        %1349 = vmatpush1.xpose.msra.mxu0 0.0
        %1350 = vmatprep.subr.mxu0 0.0
        %1351 = vmatpush1.xpose.msra.mxu0 0.0
        %1352 = vmatprep.subr.mxu0 0.0
        %1353 = vmatpush1.xpose.msra.mxu0 0.0
        %1354 = vmatprep.subr.mxu0 0.0
        %1355 = vmatpush1.xpose.msra.mxu0 0.0
        %1356 = vmatprep.subr.mxu0 0.0
        %1357 = vmatpush1.xpose.msra.mxu0 0.0
        %1358 = vmatprep.subr.mxu0 0.0
        %1359 = vmatpush1.xpose.msra.mxu0 0.0
        %1360 = vmatprep.subr.mxu0 0.0
        %1361 = vmatpush1.xpose.msra.mxu0 0.0
        %1362 = vmatprep.subr.mxu0 0.0
        %1363 = vmatpush1.xpose.msra.mxu0 0.0
        %1364 = vmatprep.subr.mxu0 0.0
        %1365 = vmatpush1.xpose.msra.mxu0 0.0
        %1366 = vmatprep.subr.mxu0 0.0
        %1367 = vmatpush1.xpose.msra.mxu0 0.0
        %1368 = vmatprep.subr.mxu0 0.0
        %1369 = vmatpush1.xpose.msra.mxu0 0.0
        %1370 = vmatprep.subr.mxu0 0.0
        %1371 = vmatpush1.xpose.msra.mxu0 0.0
        %1372 = vmatprep.subr.mxu0 0.0
        %1373 = vmatpush1.xpose.msra.mxu0 0.0
        %1374 = vmatprep.subr.mxu0 0.0
        %1375 = vmatpush1.xpose.msra.mxu0 0.0
        %1376 = vmatprep.subr.mxu0 0.0
        %1377 = vmatpush1.xpose.msra.mxu0 0.0
        %1378 = vmatprep.subr.mxu0 0.0
        %1379 = vmatpush1.xpose.msra.mxu0 0.0
        %1380 = vmatprep.subr.mxu0 0.0
        %1381 = vmatpush1.xpose.msra.mxu0 0.0
        %1382 = vmatprep.subr.mxu0 0.0
        %1383 = vmatpush1.xpose.msra.mxu0 0.0
        %1384 = vmatprep.subr.mxu0 0.0
        %1385 = vmatpush1.xpose.msra.mxu0 0.0
        %1386 = vmatprep.subr.mxu0 0.0
        %1387 = vmatpush1.xpose.msra.mxu0 0.0
        %1388 = vmatprep.subr.mxu0 0.0
        %1389 = vmatpush1.xpose.msra.mxu0 0.0
        %1390 = vmatprep.subr.mxu0 0.0
        %1391 = vmatpush1.xpose.msra.mxu0 0.0
        %1392 = vmatprep.subr.mxu0 0.0
        %1393 = vmatpush1.xpose.msra.mxu0 0.0
        %1394 = vmatprep.subr.mxu0 0.0
        %1395 = vmatpush1.xpose.msra.mxu0 0.0
        %1396 = vmatprep.subr.mxu0 0.0
        %1397 = vmatpush1.xpose.msra.mxu0 0.0
        %1398 = vmatprep.subr.mxu0 0.0
        %1399 = vmatpush1.xpose.msra.mxu0 0.0
        %1400 = vmatprep.subr.mxu0 0.0
        %1401 = vmatpush1.xpose.msra.mxu0 0.0
        %1402 = vmatprep.mubr.f32.mxu0 0.0
        %1403 = vmatmul.mubr.f32.gmra.mrb[0].mxu0 %v1333
        %v1404 = vpop.f32.mrb[0].mxu0
        %v1405 = vadd.f32 0.0, %v1404
        %v1406 = vpop.f32.mrb[0].mxu0
        %1407 = vdwg.mxu0
        %v1408 = vsel %vm1103, %v1177, -inf
        %1409 = vmax.xlane.f32.xlu0 %v1408
        %v1410 = vpop.xlane.xlu0 %1409
        %v1411 = vsel %vm1103, %v1253, -inf
        %1412 = vmax.xlane.f32.xlu0 %v1411
        %v1413 = vpop.xlane.xlu0 %1412
        %v1414 = vsel %vm1103, %v1329, -inf
        %1415 = vmax.xlane.f32.xlu0 %v1414
        %v1416 = vpop.xlane.xlu0 %1415
        %v1417 = vsel %vm1103, %v1405, -inf
        %1418 = vmax.xlane.f32.xlu0 %v1417
        %v1419 = vpop.xlane.xlu0 %1418
        %v1420 = vsub.f32 %v1177, %v1410
        %v1421 = vsub.f32 %v1253, %v1413
        %v1422 = vsub.f32 %v1329, %v1416
        %v1423 = vsub.f32 %v1405, %v1419
        %v1424 = vmul.f32 %v1420, 1.442695
        %v1425 = vpow.pop %v1424
        %v1426 = vmul.f32 %v1421, 1.442695
        %v1427 = vpow.pop %v1426
        %v1428 = vmul.f32 %v1422, 1.442695
        %v1429 = vpow.pop %v1428
        %v1430 = vmul.f32 %v1423, 1.442695
        %v1431 = vpow.pop %v1430
        %v1432 = vsel %vm1103, %v1425, 0.0
        %1433 = vadd.xlane.f32.xlu0 %v1432
        %v1434 = vpop.xlane.xlu0 %1433
        %v1435 = vsel %vm1103, %v1427, 0.0
        %1436 = vadd.xlane.f32.xlu0 %v1435
        %v1437 = vpop.xlane.xlu0 %1436
        %v1438 = vsel %vm1103, %v1429, 0.0
        %1439 = vadd.xlane.f32.xlu0 %v1438
        %v1440 = vpop.xlane.xlu0 %1439
        %v1441 = vsel %vm1103, %v1431, 0.0
        %1442 = vadd.xlane.f32.xlu0 %v1441
        %v1443 = vpop.xlane.xlu0 %1442
        %v1444 = vrcp.pop %v1434
        %v1445 = vmul.f32 %v1425, %v1444
        %v1446 = vrcp.pop %v1437
        %v1447 = vmul.f32 %v1427, %v1446
        %v1448 = vrcp.pop %v1440
        %v1449 = vmul.f32 %v1429, %v1448
        %v1450 = vrcp.pop %v1443
        %v1451 = vmul.f32 %v1431, %v1450
        %1452 = vst.msk [vmem:[%s547] sm:$0xff] %vm1103, %v1445
        %1453 = vst.msk [vmem:[%s547 + $0x8] sm:$0xff] %vm1103, %v1447
        %1454 = vst.msk [vmem:[%s547 + $0x10] sm:$0xff] %vm1103, %v1449
        %1455 = vst.msk [vmem:[%s547 + $0x18] sm:$0xff] %vm1103, %v1451
        %v1456 = vld [vmem:[#allocation4] sm:$0xff]
        %v1457 = vld [vmem:[#allocation4 + $0x8] sm:$0xff]
        %v1458 = vld [vmem:[#allocation4 + $0x10] sm:$0xff]
        %v1459 = vld [vmem:[#allocation4 + $0x18] sm:$0xff]
        %v1461 = vsel %vm1103, %v1445, 0
        %1463 = vmatprep.subr.mxu0 0.0
        %1464 = vmatpush1.msra.mxu0 %v1456
        %1465 = vmatprep.subr.mxu0 0.0
        %1466 = vmatpush1.msra.mxu0 0.0
        %1467 = vmatprep.subr.mxu0 0.0
        %1468 = vmatpush1.msra.mxu0 0.0
        %1469 = vmatprep.subr.mxu0 0.0
        %1470 = vmatpush1.msra.mxu0 0.0
        %1471 = vmatprep.subr.mxu0 0.0
        %1472 = vmatpush1.msra.mxu0 0.0
        %1473 = vmatprep.subr.mxu0 0.0
        %1474 = vmatpush1.msra.mxu0 0.0
        %1475 = vmatprep.subr.mxu0 0.0
        %1476 = vmatpush1.msra.mxu0 0.0
        %1477 = vmatprep.subr.mxu0 0.0
        %1478 = vmatpush1.msra.mxu0 0.0
        %1479 = vmatprep.subr.mxu0 0.0
        %1480 = vmatpush1.msra.mxu0 0.0
        %1481 = vmatprep.subr.mxu0 0.0
        %1482 = vmatpush1.msra.mxu0 0.0
        %1483 = vmatprep.subr.mxu0 0.0
        %1484 = vmatpush1.msra.mxu0 0.0
        %1485 = vmatprep.subr.mxu0 0.0
        %1486 = vmatpush1.msra.mxu0 0.0
        %1487 = vmatprep.subr.mxu0 0.0
        %1488 = vmatpush1.msra.mxu0 0.0
        %1489 = vmatprep.subr.mxu0 0.0
        %1490 = vmatpush1.msra.mxu0 0.0
        %1491 = vmatprep.subr.mxu0 0.0
        %1492 = vmatpush1.msra.mxu0 0.0
        %1493 = vmatprep.subr.mxu0 0.0
        %1494 = vmatpush1.msra.mxu0 0.0
        %1495 = vmatprep.subr.mxu0 0.0
        %1496 = vmatpush1.msra.mxu0 0.0
        %1497 = vmatprep.subr.mxu0 0.0
        %1498 = vmatpush1.msra.mxu0 0.0
        %1499 = vmatprep.subr.mxu0 0.0
        %1500 = vmatpush1.msra.mxu0 0.0
        %1501 = vmatprep.subr.mxu0 0.0
        %1502 = vmatpush1.msra.mxu0 0.0
        %1503 = vmatprep.subr.mxu0 0.0
        %1504 = vmatpush1.msra.mxu0 0.0
        %1505 = vmatprep.subr.mxu0 0.0
        %1506 = vmatpush1.msra.mxu0 0.0
        %1507 = vmatprep.subr.mxu0 0.0
        %1508 = vmatpush1.msra.mxu0 0.0
        %1509 = vmatprep.subr.mxu0 0.0
        %1510 = vmatpush1.msra.mxu0 0.0
        %1511 = vmatprep.subr.mxu0 0.0
        %1512 = vmatpush1.msra.mxu0 0.0
        %1513 = vmatprep.subr.mxu0 0.0
        %1514 = vmatpush1.msra.mxu0 0.0
        %1515 = vmatprep.subr.mxu0 0.0
        %1516 = vmatpush1.msra.mxu0 0.0
        %1517 = vmatprep.subr.mxu0 0.0
        %1518 = vmatpush1.msra.mxu0 0.0
        %1519 = vmatprep.subr.mxu0 0.0
        %1520 = vmatpush1.msra.mxu0 0.0
        %1521 = vmatprep.subr.mxu0 0.0
        %1522 = vmatpush1.msra.mxu0 0.0
        %1523 = vmatprep.subr.mxu0 0.0
        %1524 = vmatpush1.msra.mxu0 0.0
        %1525 = vmatprep.subr.mxu0 0.0
        %1526 = vmatpush1.msra.mxu0 0.0
        %1527 = vmatprep.mubr.f32.mxu0 0.0
        %1528 = vmatmul.mubr.f32.gmra.mrb[0].mxu0 %v1461
        %v1529 = vpop.f32.mrb[0].mxu0
        %v1530 = vadd.f32 0.0, %v1529
        %v1531 = vpop.f32.mrb[0].mxu0
        %1532 = vdwg.mxu0
        %v1534 = vsel %vm1103, %v1447, 0
        %1536 = vmatprep.subr.mxu0 0.0
        %1537 = vmatpush1.msra.mxu0 %v1457
        %1538 = vmatprep.subr.mxu0 0.0
        %1539 = vmatpush1.msra.mxu0 0.0
        %1540 = vmatprep.subr.mxu0 0.0
        %1541 = vmatpush1.msra.mxu0 0.0
        %1542 = vmatprep.subr.mxu0 0.0
        %1543 = vmatpush1.msra.mxu0 0.0
        %1544 = vmatprep.subr.mxu0 0.0
        %1545 = vmatpush1.msra.mxu0 0.0
        %1546 = vmatprep.subr.mxu0 0.0
        %1547 = vmatpush1.msra.mxu0 0.0
        %1548 = vmatprep.subr.mxu0 0.0
        %1549 = vmatpush1.msra.mxu0 0.0
        %1550 = vmatprep.subr.mxu0 0.0
        %1551 = vmatpush1.msra.mxu0 0.0
        %1552 = vmatprep.subr.mxu0 0.0
        %1553 = vmatpush1.msra.mxu0 0.0
        %1554 = vmatprep.subr.mxu0 0.0
        %1555 = vmatpush1.msra.mxu0 0.0
        %1556 = vmatprep.subr.mxu0 0.0
        %1557 = vmatpush1.msra.mxu0 0.0
        %1558 = vmatprep.subr.mxu0 0.0
        %1559 = vmatpush1.msra.mxu0 0.0
        %1560 = vmatprep.subr.mxu0 0.0
        %1561 = vmatpush1.msra.mxu0 0.0
        %1562 = vmatprep.subr.mxu0 0.0
        %1563 = vmatpush1.msra.mxu0 0.0
        %1564 = vmatprep.subr.mxu0 0.0
        %1565 = vmatpush1.msra.mxu0 0.0
        %1566 = vmatprep.subr.mxu0 0.0
        %1567 = vmatpush1.msra.mxu0 0.0
        %1568 = vmatprep.subr.mxu0 0.0
        %1569 = vmatpush1.msra.mxu0 0.0
        %1570 = vmatprep.subr.mxu0 0.0
        %1571 = vmatpush1.msra.mxu0 0.0
        %1572 = vmatprep.subr.mxu0 0.0
        %1573 = vmatpush1.msra.mxu0 0.0
        %1574 = vmatprep.subr.mxu0 0.0
        %1575 = vmatpush1.msra.mxu0 0.0
        %1576 = vmatprep.subr.mxu0 0.0
        %1577 = vmatpush1.msra.mxu0 0.0
        %1578 = vmatprep.subr.mxu0 0.0
        %1579 = vmatpush1.msra.mxu0 0.0
        %1580 = vmatprep.subr.mxu0 0.0
        %1581 = vmatpush1.msra.mxu0 0.0
        %1582 = vmatprep.subr.mxu0 0.0
        %1583 = vmatpush1.msra.mxu0 0.0
        %1584 = vmatprep.subr.mxu0 0.0
        %1585 = vmatpush1.msra.mxu0 0.0
        %1586 = vmatprep.subr.mxu0 0.0
        %1587 = vmatpush1.msra.mxu0 0.0
        %1588 = vmatprep.subr.mxu0 0.0
        %1589 = vmatpush1.msra.mxu0 0.0
        %1590 = vmatprep.subr.mxu0 0.0
        %1591 = vmatpush1.msra.mxu0 0.0
        %1592 = vmatprep.subr.mxu0 0.0
        %1593 = vmatpush1.msra.mxu0 0.0
        %1594 = vmatprep.subr.mxu0 0.0
        %1595 = vmatpush1.msra.mxu0 0.0
        %1596 = vmatprep.subr.mxu0 0.0
        %1597 = vmatpush1.msra.mxu0 0.0
        %1598 = vmatprep.subr.mxu0 0.0
        %1599 = vmatpush1.msra.mxu0 0.0
        %1600 = vmatprep.mubr.f32.mxu0 0.0
        %1601 = vmatmul.mubr.f32.gmra.mrb[0].mxu0 %v1534
        %v1602 = vpop.f32.mrb[0].mxu0
        %v1603 = vadd.f32 0.0, %v1602
        %v1604 = vpop.f32.mrb[0].mxu0
        %1605 = vdwg.mxu0
        %v1607 = vsel %vm1103, %v1449, 0
        %1609 = vmatprep.subr.mxu0 0.0
        %1610 = vmatpush1.msra.mxu0 %v1458
        %1611 = vmatprep.subr.mxu0 0.0
        %1612 = vmatpush1.msra.mxu0 0.0
        %1613 = vmatprep.subr.mxu0 0.0
        %1614 = vmatpush1.msra.mxu0 0.0
        %1615 = vmatprep.subr.mxu0 0.0
        %1616 = vmatpush1.msra.mxu0 0.0
        %1617 = vmatprep.subr.mxu0 0.0
        %1618 = vmatpush1.msra.mxu0 0.0
        %1619 = vmatprep.subr.mxu0 0.0
        %1620 = vmatpush1.msra.mxu0 0.0
        %1621 = vmatprep.subr.mxu0 0.0
        %1622 = vmatpush1.msra.mxu0 0.0
        %1623 = vmatprep.subr.mxu0 0.0
        %1624 = vmatpush1.msra.mxu0 0.0
        %1625 = vmatprep.subr.mxu0 0.0
        %1626 = vmatpush1.msra.mxu0 0.0
        %1627 = vmatprep.subr.mxu0 0.0
        %1628 = vmatpush1.msra.mxu0 0.0
        %1629 = vmatprep.subr.mxu0 0.0
        %1630 = vmatpush1.msra.mxu0 0.0
        %1631 = vmatprep.subr.mxu0 0.0
        %1632 = vmatpush1.msra.mxu0 0.0
        %1633 = vmatprep.subr.mxu0 0.0
        %1634 = vmatpush1.msra.mxu0 0.0
        %1635 = vmatprep.subr.mxu0 0.0
        %1636 = vmatpush1.msra.mxu0 0.0
        %1637 = vmatprep.subr.mxu0 0.0
        %1638 = vmatpush1.msra.mxu0 0.0
        %1639 = vmatprep.subr.mxu0 0.0
        %1640 = vmatpush1.msra.mxu0 0.0
        %1641 = vmatprep.subr.mxu0 0.0
        %1642 = vmatpush1.msra.mxu0 0.0
        %1643 = vmatprep.subr.mxu0 0.0
        %1644 = vmatpush1.msra.mxu0 0.0
        %1645 = vmatprep.subr.mxu0 0.0
        %1646 = vmatpush1.msra.mxu0 0.0
        %1647 = vmatprep.subr.mxu0 0.0
        %1648 = vmatpush1.msra.mxu0 0.0
        %1649 = vmatprep.subr.mxu0 0.0
        %1650 = vmatpush1.msra.mxu0 0.0
        %1651 = vmatprep.subr.mxu0 0.0
        %1652 = vmatpush1.msra.mxu0 0.0
        %1653 = vmatprep.subr.mxu0 0.0
        %1654 = vmatpush1.msra.mxu0 0.0
        %1655 = vmatprep.subr.mxu0 0.0
        %1656 = vmatpush1.msra.mxu0 0.0
        %1657 = vmatprep.subr.mxu0 0.0
        %1658 = vmatpush1.msra.mxu0 0.0
        %1659 = vmatprep.subr.mxu0 0.0
        %1660 = vmatpush1.msra.mxu0 0.0
        %1661 = vmatprep.subr.mxu0 0.0
        %1662 = vmatpush1.msra.mxu0 0.0
        %1663 = vmatprep.subr.mxu0 0.0
        %1664 = vmatpush1.msra.mxu0 0.0
        %1665 = vmatprep.subr.mxu0 0.0
        %1666 = vmatpush1.msra.mxu0 0.0
        %1667 = vmatprep.subr.mxu0 0.0
        %1668 = vmatpush1.msra.mxu0 0.0
        %1669 = vmatprep.subr.mxu0 0.0
        %1670 = vmatpush1.msra.mxu0 0.0
        %1671 = vmatprep.subr.mxu0 0.0
        %1672 = vmatpush1.msra.mxu0 0.0
        %1673 = vmatprep.mubr.f32.mxu0 0.0
        %1674 = vmatmul.mubr.f32.gmra.mrb[0].mxu0 %v1607
        %v1675 = vpop.f32.mrb[0].mxu0
        %v1676 = vadd.f32 0.0, %v1675
        %v1677 = vpop.f32.mrb[0].mxu0
        %1678 = vdwg.mxu0
        %v1680 = vsel %vm1103, %v1451, 0
        %1682 = vmatprep.subr.mxu0 0.0
        %1683 = vmatpush1.msra.mxu0 %v1459
        %1684 = vmatprep.subr.mxu0 0.0
        %1685 = vmatpush1.msra.mxu0 0.0
        %1686 = vmatprep.subr.mxu0 0.0
        %1687 = vmatpush1.msra.mxu0 0.0
        %1688 = vmatprep.subr.mxu0 0.0
        %1689 = vmatpush1.msra.mxu0 0.0
        %1690 = vmatprep.subr.mxu0 0.0
        %1691 = vmatpush1.msra.mxu0 0.0
        %1692 = vmatprep.subr.mxu0 0.0
        %1693 = vmatpush1.msra.mxu0 0.0
        %1694 = vmatprep.subr.mxu0 0.0
        %1695 = vmatpush1.msra.mxu0 0.0
        %1696 = vmatprep.subr.mxu0 0.0
        %1697 = vmatpush1.msra.mxu0 0.0
        %1698 = vmatprep.subr.mxu0 0.0
        %1699 = vmatpush1.msra.mxu0 0.0
        %1700 = vmatprep.subr.mxu0 0.0
        %1701 = vmatpush1.msra.mxu0 0.0
        %1702 = vmatprep.subr.mxu0 0.0
        %1703 = vmatpush1.msra.mxu0 0.0
        %1704 = vmatprep.subr.mxu0 0.0
        %1705 = vmatpush1.msra.mxu0 0.0
        %1706 = vmatprep.subr.mxu0 0.0
        %1707 = vmatpush1.msra.mxu0 0.0
        %1708 = vmatprep.subr.mxu0 0.0
        %1709 = vmatpush1.msra.mxu0 0.0
        %1710 = vmatprep.subr.mxu0 0.0
        %1711 = vmatpush1.msra.mxu0 0.0
        %1712 = vmatprep.subr.mxu0 0.0
        %1713 = vmatpush1.msra.mxu0 0.0
        %1714 = vmatprep.subr.mxu0 0.0
        %1715 = vmatpush1.msra.mxu0 0.0
        %1716 = vmatprep.subr.mxu0 0.0
        %1717 = vmatpush1.msra.mxu0 0.0
        %1718 = vmatprep.subr.mxu0 0.0
        %1719 = vmatpush1.msra.mxu0 0.0
        %1720 = vmatprep.subr.mxu0 0.0
        %1721 = vmatpush1.msra.mxu0 0.0
        %1722 = vmatprep.subr.mxu0 0.0
        %1723 = vmatpush1.msra.mxu0 0.0
        %1724 = vmatprep.subr.mxu0 0.0
        %1725 = vmatpush1.msra.mxu0 0.0
        %1726 = vmatprep.subr.mxu0 0.0
        %1727 = vmatpush1.msra.mxu0 0.0
        %1728 = vmatprep.subr.mxu0 0.0
        %1729 = vmatpush1.msra.mxu0 0.0
        %1730 = vmatprep.subr.mxu0 0.0
        %1731 = vmatpush1.msra.mxu0 0.0
        %1732 = vmatprep.subr.mxu0 0.0
        %1733 = vmatpush1.msra.mxu0 0.0
        %1734 = vmatprep.subr.mxu0 0.0
        %1735 = vmatpush1.msra.mxu0 0.0
        %1736 = vmatprep.subr.mxu0 0.0
        %1737 = vmatpush1.msra.mxu0 0.0
        %1738 = vmatprep.subr.mxu0 0.0
        %1739 = vmatpush1.msra.mxu0 0.0
        %1740 = vmatprep.subr.mxu0 0.0
        %1741 = vmatpush1.msra.mxu0 0.0
        %1742 = vmatprep.subr.mxu0 0.0
        %1743 = vmatpush1.msra.mxu0 0.0
        %1744 = vmatprep.subr.mxu0 0.0
        %1745 = vmatpush1.msra.mxu0 0.0
        %1746 = vmatprep.mubr.f32.mxu0 0.0
        %1747 = vmatmul.mubr.f32.gmra.mrb[0].mxu0 %v1680
        %v1748 = vpop.f32.mrb[0].mxu0
        %v1749 = vadd.f32 0.0, %v1748
        %v1750 = vpop.f32.mrb[0].mxu0
        %1751 = vdwg.mxu0
        %v1752 = vcombine.low %v1530, %v1676
        %v1753 = vcombine.high %v1530, %v1676
        %v1755 = vunpack.c.l.s4 1983009808
        %v1756 = vunpack.c.0.s8 %v1755
        %v1757 = vlaneseq
        %v1758 = vshrl.u32 %v1757, 7
        %v1759 = vsub.s32 %v1756, %v1758
        %v1760 = vrot.slane %v1752, %v1759
        %v1762 = vunpack.c.l.s4 1983009808
        %v1763 = vunpack.c.0.s8 %v1762
        %v1764 = vlaneseq
        %v1765 = vshrl.u32 %v1764, 7
        %v1766 = vsub.s32 %v1763, %v1765
        %v1767 = vrot.slane %v1753, %v1766
        %v1768 = vcombine.low %v1603, %v1749
        %v1769 = vcombine.high %v1603, %v1749
        %v1771 = vunpack.c.l.s4 1983009808
        %v1772 = vunpack.c.0.s8 %v1771
        %v1773 = vlaneseq
        %v1774 = vshrl.u32 %v1773, 7
        %v1775 = vsub.s32 %v1772, %v1774
        %v1776 = vrot.slane %v1768, %v1775
        %v1778 = vunpack.c.l.s4 1983009808
        %v1779 = vunpack.c.0.s8 %v1778
        %v1780 = vlaneseq
        %v1781 = vshrl.u32 %v1780, 7
        %v1782 = vsub.s32 %v1779, %v1781
        %v1783 = vrot.slane %v1769, %v1782
        %v1784 = vcombine.low %v1760, %v1776
        %v1785 = vcombine.high %v1760, %v1776
        %v1787 = vunpack.c.l.s4 1934713408
        %v1788 = vunpack.c.0.s8 %v1787
        %v1789 = vlaneseq
        %v1790 = vshrl.u32 %v1789, 7
        %v1791 = vsub.s32 %v1788, %v1790
        %v1792 = vrot.slane %v1784, %v1791
        %v1794 = vunpack.c.l.s4 1934713408
        %v1795 = vunpack.c.0.s8 %v1794
        %v1796 = vlaneseq
        %v1797 = vshrl.u32 %v1796, 7
        %v1798 = vsub.s32 %v1795, %v1797
        %v1799 = vrot.slane %v1785, %v1798
        %v1800 = vcombine.low %v1767, %v1783
        %v1801 = vcombine.high %v1767, %v1783
        %v1803 = vunpack.c.l.s4 1934713408
        %v1804 = vunpack.c.0.s8 %v1803
        %v1805 = vlaneseq
        %v1806 = vshrl.u32 %v1805, 7
        %v1807 = vsub.s32 %v1804, %v1806
        %v1808 = vrot.slane %v1800, %v1807
        %v1810 = vunpack.c.l.s4 1934713408
        %v1811 = vunpack.c.0.s8 %v1810
        %v1812 = vlaneseq
        %v1813 = vshrl.u32 %v1812, 7
        %v1814 = vsub.s32 %v1811, %v1813
        %v1815 = vrot.slane %v1801, %v1814
        %v1816 = vcombine.high %v1792, 0.0
        %v1817 = vcombine.high %v1799, 0.0
        %v1818 = vcombine.high %v1808, 0.0
        %v1819 = vcombine.high %v1815, 0.0
        %v1820 = vcombine.low %v1792, %v1799
        %v1822 = vunpack.c.l.s4 1983009808
        %v1823 = vunpack.c.0.s8 %v1822
        %v1824 = vlaneseq
        %v1825 = vshrl.u32 %v1824, 7
        %v1826 = vsub.s32 %v1823, %v1825
        %v1827 = vrot.slane %v1820, %v1826
        %v1828 = vcombine.low %v1816, %v1817
        %v1830 = vunpack.c.l.s4 1983009808
        %v1831 = vunpack.c.0.s8 %v1830
        %v1832 = vlaneseq
        %v1833 = vshrl.u32 %v1832, 7
        %v1834 = vsub.s32 %v1831, %v1833
        %v1835 = vrot.slane %v1828, %v1834
        %v1836 = vcombine.low %v1808, %v1815
        %v1838 = vunpack.c.l.s4 1983009808
        %v1839 = vunpack.c.0.s8 %v1838
        %v1840 = vlaneseq
        %v1841 = vshrl.u32 %v1840, 7
        %v1842 = vsub.s32 %v1839, %v1841
        %v1843 = vrot.slane %v1836, %v1842
        %v1844 = vcombine.low %v1818, %v1819
        %v1846 = vunpack.c.l.s4 1983009808
        %v1847 = vunpack.c.0.s8 %v1846
        %v1848 = vlaneseq
        %v1849 = vshrl.u32 %v1848, 7
        %v1850 = vsub.s32 %v1847, %v1849
        %v1851 = vrot.slane %v1844, %v1850
        %v1852 = vcombine.low %v1827, %v1835
        %v1853 = vcombine.high %v1827, %v1835
        %v1855 = vunpack.c.l.s4 1934713408
        %v1856 = vunpack.c.0.s8 %v1855
        %v1857 = vlaneseq
        %v1858 = vshrl.u32 %v1857, 7
        %v1859 = vsub.s32 %v1856, %v1858
        %v1860 = vrot.slane %v1852, %v1859
        %v1862 = vunpack.c.l.s4 1934713408
        %v1863 = vunpack.c.0.s8 %v1862
        %v1864 = vlaneseq
        %v1865 = vshrl.u32 %v1864, 7
        %v1866 = vsub.s32 %v1863, %v1865
        %v1867 = vrot.slane %v1853, %v1866
        %v1868 = vcombine.low %v1843, %v1851
        %v1869 = vcombine.high %v1843, %v1851
        %v1871 = vunpack.c.l.s4 1934713408
        %v1872 = vunpack.c.0.s8 %v1871
        %v1873 = vlaneseq
        %v1874 = vshrl.u32 %v1873, 7
        %v1875 = vsub.s32 %v1872, %v1874
        %v1876 = vrot.slane %v1868, %v1875
        %v1878 = vunpack.c.l.s4 1934713408
        %v1879 = vunpack.c.0.s8 %v1878
        %v1880 = vlaneseq
        %v1881 = vshrl.u32 %v1880, 7
        %v1882 = vsub.s32 %v1879, %v1881
        %v1883 = vrot.slane %v1869, %v1882
        %v1884 = vcombine.low %v1860, %v1876
        %v1885 = vcombine.high %v1860, %v1876
        %v1886 = vcombine.low %v1867, %v1883
        %v1887 = vcombine.high %v1867, %v1883
        %1889 = vrot.lane.b32.xlu0 %v1885, 8
        %v1890 = vpop.permute.xlu0 %1889
        %1893 = vrot.lane.b32.xlu0 %v1886, 16
        %v1894 = vpop.permute.xlu0 %1893
        %1897 = vrot.lane.b32.xlu0 %v1887, 24
        %v1898 = vpop.permute.xlu0 %1897
        %v1900 = vsel %vm1103, %v1884, %v1890
        %vm1901 = vcmask 130048
        %v1902 = vsel %vm1901, %v1900, %v1894
        %vm1903 = vcmask 195584
        %v1904 = vsel %vm1903, %v1902, %v1898
        %v1905 = vld [vmem:[%s3] sm:$0xff]
        %v1906 = vld [vmem:[%s3 + $0x8] sm:$0xff]
        %v1907 = vld [vmem:[%s3 + $0x10] sm:$0xff]
        %v1908 = vld [vmem:[%s3 + $0x18] sm:$0xff]
        %v1909 = vld [vmem:[%s4] sm:$0x1]
        %v1911 = vlaneseq
        %v1912 = vshrl.u32 %v1911, 7
        %v1913 = vsub.s32 0, %v1912
        %v1914 = vrot.slane %v1909, %v1913
        %vm1916 = vcmask 261120
        %v1918 = vsel %vm1916, %v1904, 0
        %1920 = vmatprep.subr.mxu0 0.0
        %1921 = vmatpush1.msra.mxu0 %v1905
        %1922 = vmatprep.subr.mxu0 0.0
        %1923 = vmatpush1.msra.mxu0 %v1906
        %1924 = vmatprep.subr.mxu0 0.0
        %1925 = vmatpush1.msra.mxu0 %v1907
        %1926 = vmatprep.subr.mxu0 0.0
        %1927 = vmatpush1.msra.mxu0 %v1908
        %1928 = vmatprep.subr.mxu0 0.0
        %1929 = vmatpush1.msra.mxu0 0.0
        %1930 = vmatprep.subr.mxu0 0.0
        %1931 = vmatpush1.msra.mxu0 0.0
        %1932 = vmatprep.subr.mxu0 0.0
        %1933 = vmatpush1.msra.mxu0 0.0
        %1934 = vmatprep.subr.mxu0 0.0
        %1935 = vmatpush1.msra.mxu0 0.0
        %1936 = vmatprep.subr.mxu0 0.0
        %1937 = vmatpush1.msra.mxu0 0.0
        %1938 = vmatprep.subr.mxu0 0.0
        %1939 = vmatpush1.msra.mxu0 0.0
        %1940 = vmatprep.subr.mxu0 0.0
        %1941 = vmatpush1.msra.mxu0 0.0
        %1942 = vmatprep.subr.mxu0 0.0
        %1943 = vmatpush1.msra.mxu0 0.0
        %1944 = vmatprep.subr.mxu0 0.0
        %1945 = vmatpush1.msra.mxu0 0.0
        %1946 = vmatprep.subr.mxu0 0.0
        %1947 = vmatpush1.msra.mxu0 0.0
        %1948 = vmatprep.subr.mxu0 0.0
        %1949 = vmatpush1.msra.mxu0 0.0
        %1950 = vmatprep.subr.mxu0 0.0
        %1951 = vmatpush1.msra.mxu0 0.0
        %1952 = vmatprep.subr.mxu0 0.0
        %1953 = vmatpush1.msra.mxu0 0.0
        %1954 = vmatprep.subr.mxu0 0.0
        %1955 = vmatpush1.msra.mxu0 0.0
        %1956 = vmatprep.subr.mxu0 0.0
        %1957 = vmatpush1.msra.mxu0 0.0
        %1958 = vmatprep.subr.mxu0 0.0
        %1959 = vmatpush1.msra.mxu0 0.0
        %1960 = vmatprep.subr.mxu0 0.0
        %1961 = vmatpush1.msra.mxu0 0.0
        %1962 = vmatprep.subr.mxu0 0.0
        %1963 = vmatpush1.msra.mxu0 0.0
        %1964 = vmatprep.subr.mxu0 0.0
        %1965 = vmatpush1.msra.mxu0 0.0
        %1966 = vmatprep.subr.mxu0 0.0
        %1967 = vmatpush1.msra.mxu0 0.0
        %1968 = vmatprep.subr.mxu0 0.0
        %1969 = vmatpush1.msra.mxu0 0.0
        %1970 = vmatprep.subr.mxu0 0.0
        %1971 = vmatpush1.msra.mxu0 0.0
        %1972 = vmatprep.subr.mxu0 0.0
        %1973 = vmatpush1.msra.mxu0 0.0
        %1974 = vmatprep.subr.mxu0 0.0
        %1975 = vmatpush1.msra.mxu0 0.0
        %1976 = vmatprep.subr.mxu0 0.0
        %1977 = vmatpush1.msra.mxu0 0.0
        %1978 = vmatprep.subr.mxu0 0.0
        %1979 = vmatpush1.msra.mxu0 0.0
        %1980 = vmatprep.subr.mxu0 0.0
        %1981 = vmatpush1.msra.mxu0 0.0
        %1982 = vmatprep.subr.mxu0 0.0
        %1983 = vmatpush1.msra.mxu0 0.0
        %1984 = vmatprep.mubr.f32.mxu0 0.0
        %1985 = vmatmul.mubr.f32.gmra.mrb[0].mxu0 %v1918
        %v1986 = vpop.f32.mrb[0].mxu0
        %v1987 = vadd.f32 %v1914, %v1986
        %v1988 = vpop.f32.mrb[0].mxu0
        %1989 = vdwg.mxu0
        %s1990 = scalar_lea.vmem %s486, %s1093 [#allocation5]
        %v1991 = vld [vmem:[%s1990] sm:$0xff]
        %v1992 = vadd.f32 %v1987, %v1991
        %v1993 = vld [vmem:[#allocation8] sm:$0x1]
        %v1994 = vld [vmem:[#allocation10] sm:$0x1]
        %v1995 = vsel %vm1916, %v1992, 0.0
        %1996 = vadd.xlane.f32.xlu0 %v1995
        %v1997 = vpop.xlane.xlu0 %1996
        %v1998 = vrcp.pop 32.0
        %v1999 = vmul.f32 %v1997, %v1998
        %v2000 = vsub.f32 %v1992, %v1999
        %v2001 = vmul.f32 %v2000, %v2000
        %v2002 = vsel %vm1916, %v2001, 0.0
        %2003 = vadd.xlane.f32.xlu0 %v2002
        %v2004 = vpop.xlane.xlu0 %2003
        %v2005 = vmul.f32 %v2004, %v1998
        %v2006 = vadd.f32 %v2005, 1e-05
        %v2007 = vrsqrt.pop %v2006
        %v2008 = vmul.f32 %v2000, %v2007
        %v2010 = vlaneseq
        %v2011 = vshrl.u32 %v2010, 7
        %v2012 = vsub.s32 0, %v2011
        %v2013 = vrot.slane %v1993, %v2012
        %v2015 = vmul.f32 %v2008, %v2013
        %v2017 = vlaneseq
        %v2018 = vshrl.u32 %v2017, 7
        %v2019 = vsub.s32 0, %v2018
        %v2020 = vrot.slane %v1994, %v2019
        %v2022 = vadd.f32 %v2015, %v2020
        %v2023 = vld [vmem:[%s7] sm:$0xff]
        %v2024 = vld [vmem:[%s7 + $0x8] sm:$0xff]
        %v2025 = vld [vmem:[%s7 + $0x10] sm:$0xff]
        %v2026 = vld [vmem:[%s7 + $0x18] sm:$0xff]
        %v2027 = vld [vmem:[#allocation11] sm:$0x1]
        %v2029 = vlaneseq
        %v2030 = vshrl.u32 %v2029, 7
        %v2031 = vsub.s32 0, %v2030
        %v2032 = vrot.slane %v2027, %v2031
        %v2035 = vsel %vm1916, %v2022, 0
        %2037 = vmatprep.subr.mxu0 0.0
        %2038 = vmatpush1.msra.mxu0 %v2023
        %2039 = vmatprep.subr.mxu0 0.0
        %2040 = vmatpush1.msra.mxu0 %v2024
        %2041 = vmatprep.subr.mxu0 0.0
        %2042 = vmatpush1.msra.mxu0 %v2025
        %2043 = vmatprep.subr.mxu0 0.0
        %2044 = vmatpush1.msra.mxu0 %v2026
        %2045 = vmatprep.subr.mxu0 0.0
        %2046 = vmatpush1.msra.mxu0 0.0
        %2047 = vmatprep.subr.mxu0 0.0
        %2048 = vmatpush1.msra.mxu0 0.0
        %2049 = vmatprep.subr.mxu0 0.0
        %2050 = vmatpush1.msra.mxu0 0.0
        %2051 = vmatprep.subr.mxu0 0.0
        %2052 = vmatpush1.msra.mxu0 0.0
        %2053 = vmatprep.subr.mxu0 0.0
        %2054 = vmatpush1.msra.mxu0 0.0
        %2055 = vmatprep.subr.mxu0 0.0
        %2056 = vmatpush1.msra.mxu0 0.0
        %2057 = vmatprep.subr.mxu0 0.0
        %2058 = vmatpush1.msra.mxu0 0.0
        %2059 = vmatprep.subr.mxu0 0.0
        %2060 = vmatpush1.msra.mxu0 0.0
        %2061 = vmatprep.subr.mxu0 0.0
        %2062 = vmatpush1.msra.mxu0 0.0
        %2063 = vmatprep.subr.mxu0 0.0
        %2064 = vmatpush1.msra.mxu0 0.0
        %2065 = vmatprep.subr.mxu0 0.0
        %2066 = vmatpush1.msra.mxu0 0.0
        %2067 = vmatprep.subr.mxu0 0.0
        %2068 = vmatpush1.msra.mxu0 0.0
        %2069 = vmatprep.subr.mxu0 0.0
        %2070 = vmatpush1.msra.mxu0 0.0
        %2071 = vmatprep.subr.mxu0 0.0
        %2072 = vmatpush1.msra.mxu0 0.0
        %2073 = vmatprep.subr.mxu0 0.0
        %2074 = vmatpush1.msra.mxu0 0.0
        %2075 = vmatprep.subr.mxu0 0.0
        %2076 = vmatpush1.msra.mxu0 0.0
        %2077 = vmatprep.subr.mxu0 0.0
        %2078 = vmatpush1.msra.mxu0 0.0
        %2079 = vmatprep.subr.mxu0 0.0
        %2080 = vmatpush1.msra.mxu0 0.0
        %2081 = vmatprep.subr.mxu0 0.0
        %2082 = vmatpush1.msra.mxu0 0.0
        %2083 = vmatprep.subr.mxu0 0.0
        %2084 = vmatpush1.msra.mxu0 0.0
        %2085 = vmatprep.subr.mxu0 0.0
        %2086 = vmatpush1.msra.mxu0 0.0
        %2087 = vmatprep.subr.mxu0 0.0
        %2088 = vmatpush1.msra.mxu0 0.0
        %2089 = vmatprep.subr.mxu0 0.0
        %2090 = vmatpush1.msra.mxu0 0.0
        %2091 = vmatprep.subr.mxu0 0.0
        %2092 = vmatpush1.msra.mxu0 0.0
        %2093 = vmatprep.subr.mxu0 0.0
        %2094 = vmatpush1.msra.mxu0 0.0
        %2095 = vmatprep.subr.mxu0 0.0
        %2096 = vmatpush1.msra.mxu0 0.0
        %2097 = vmatprep.subr.mxu0 0.0
        %2098 = vmatpush1.msra.mxu0 0.0
        %2099 = vmatprep.subr.mxu0 0.0
        %2100 = vmatpush1.msra.mxu0 0.0
        %2101 = vmatprep.mubr.f32.mxu0 0.0
        %2102 = vmatmul.mubr.f32.gmra.mrb[0].mxu0 %v2035
        %v2103 = vpop.f32.mrb[0].mxu0
        %v2104 = vadd.f32 %v2032, %v2103
        %v2105 = vpop.f32.mrb[0].mxu0
        %2106 = vdwg.mxu0
        %v2107 = vmax.f32 %v2104, 0.0
        %v2108 = vld [vmem:[%s9] sm:$0xff]
        %v2109 = vld [vmem:[%s9 + $0x8] sm:$0xff]
        %v2110 = vld [vmem:[%s9 + $0x10] sm:$0xff]
        %v2111 = vld [vmem:[%s9 + $0x18] sm:$0xff]
        %v2112 = vld [vmem:[%s9 + $0x20] sm:$0xff]
        %v2113 = vld [vmem:[%s9 + $0x28] sm:$0xff]
        %v2114 = vld [vmem:[%s9 + $0x30] sm:$0xff]
        %v2115 = vld [vmem:[%s9 + $0x38] sm:$0xff]
        %v2116 = vld [vmem:[%s10] sm:$0x1]
        %v2118 = vlaneseq
        %v2119 = vshrl.u32 %v2118, 7
        %v2120 = vsub.s32 0, %v2119
        %v2121 = vrot.slane %v2116, %v2120
        %vm2123 = vcmask 523264
        %v2125 = vsel %vm2123, %v2107, 0
        %2127 = vmatprep.subr.mxu0 0.0
        %2128 = vmatpush1.msra.mxu0 %v2108
        %2129 = vmatprep.subr.mxu0 0.0
        %2130 = vmatpush1.msra.mxu0 %v2109
        %2131 = vmatprep.subr.mxu0 0.0
        %2132 = vmatpush1.msra.mxu0 %v2110
        %2133 = vmatprep.subr.mxu0 0.0
        %2134 = vmatpush1.msra.mxu0 %v2111
        %2135 = vmatprep.subr.mxu0 0.0
        %2136 = vmatpush1.msra.mxu0 %v2112
        %2137 = vmatprep.subr.mxu0 0.0
        %2138 = vmatpush1.msra.mxu0 %v2113
        %2139 = vmatprep.subr.mxu0 0.0
        %2140 = vmatpush1.msra.mxu0 %v2114
        %2141 = vmatprep.subr.mxu0 0.0
        %2142 = vmatpush1.msra.mxu0 %v2115
        %2143 = vmatprep.subr.mxu0 0.0
        %2144 = vmatpush1.msra.mxu0 0.0
        %2145 = vmatprep.subr.mxu0 0.0
        %2146 = vmatpush1.msra.mxu0 0.0
        %2147 = vmatprep.subr.mxu0 0.0
        %2148 = vmatpush1.msra.mxu0 0.0
        %2149 = vmatprep.subr.mxu0 0.0
        %2150 = vmatpush1.msra.mxu0 0.0
        %2151 = vmatprep.subr.mxu0 0.0
        %2152 = vmatpush1.msra.mxu0 0.0
        %2153 = vmatprep.subr.mxu0 0.0
        %2154 = vmatpush1.msra.mxu0 0.0
        %2155 = vmatprep.subr.mxu0 0.0
        %2156 = vmatpush1.msra.mxu0 0.0
        %2157 = vmatprep.subr.mxu0 0.0
        %2158 = vmatpush1.msra.mxu0 0.0
        %2159 = vmatprep.subr.mxu0 0.0
        %2160 = vmatpush1.msra.mxu0 0.0
        %2161 = vmatprep.subr.mxu0 0.0
        %2162 = vmatpush1.msra.mxu0 0.0
        %2163 = vmatprep.subr.mxu0 0.0
        %2164 = vmatpush1.msra.mxu0 0.0
        %2165 = vmatprep.subr.mxu0 0.0
        %2166 = vmatpush1.msra.mxu0 0.0
        %2167 = vmatprep.subr.mxu0 0.0
        %2168 = vmatpush1.msra.mxu0 0.0
        %2169 = vmatprep.subr.mxu0 0.0
        %2170 = vmatpush1.msra.mxu0 0.0
        %2171 = vmatprep.subr.mxu0 0.0
        %2172 = vmatpush1.msra.mxu0 0.0
        %2173 = vmatprep.subr.mxu0 0.0
        %2174 = vmatpush1.msra.mxu0 0.0
        %2175 = vmatprep.subr.mxu0 0.0
        %2176 = vmatpush1.msra.mxu0 0.0
        %2177 = vmatprep.subr.mxu0 0.0
        %2178 = vmatpush1.msra.mxu0 0.0
        %2179 = vmatprep.subr.mxu0 0.0
        %2180 = vmatpush1.msra.mxu0 0.0
        %2181 = vmatprep.subr.mxu0 0.0
        %2182 = vmatpush1.msra.mxu0 0.0
        %2183 = vmatprep.subr.mxu0 0.0
        %2184 = vmatpush1.msra.mxu0 0.0
        %2185 = vmatprep.subr.mxu0 0.0
        %2186 = vmatpush1.msra.mxu0 0.0
        %2187 = vmatprep.subr.mxu0 0.0
        %2188 = vmatpush1.msra.mxu0 0.0
        %2189 = vmatprep.subr.mxu0 0.0
        %2190 = vmatpush1.msra.mxu0 0.0
        %2191 = vmatprep.mubr.f32.mxu0 0.0
        %2192 = vmatmul.mubr.f32.gmra.mrb[0].mxu0 %v2125
        %v2193 = vpop.f32.mrb[0].mxu0
        %v2194 = vadd.f32 %v2121, %v2193
        %v2195 = vpop.f32.mrb[0].mxu0
        %2196 = vdwg.mxu0
        %v2197 = vadd.f32 %v2194, %v2022
        %v2198 = vld [vmem:[%s11] sm:$0x1]
        %v2199 = vld [vmem:[%s12] sm:$0x1]
        %v2200 = vsel %vm1916, %v2197, 0.0
        %2201 = vadd.xlane.f32.xlu0 %v2200
        %v2202 = vpop.xlane.xlu0 %2201
        %v2203 = vmul.f32 %v2202, %v1998
        %v2204 = vsub.f32 %v2197, %v2203
        %v2205 = vmul.f32 %v2204, %v2204
        %v2206 = vsel %vm1916, %v2205, 0.0
        %2207 = vadd.xlane.f32.xlu0 %v2206
        %v2208 = vpop.xlane.xlu0 %2207
        %v2209 = vmul.f32 %v2208, %v1998
        %v2210 = vadd.f32 %v2209, 1e-05
        %v2211 = vrsqrt.pop %v2210
        %v2212 = vmul.f32 %v2204, %v2211
        %v2214 = vlaneseq
        %v2215 = vshrl.u32 %v2214, 7
        %v2216 = vsub.s32 0, %v2215
        %v2217 = vrot.slane %v2198, %v2216
        %v2219 = vmul.f32 %v2212, %v2217
        %v2221 = vlaneseq
        %v2222 = vshrl.u32 %v2221, 7
        %v2223 = vsub.s32 0, %v2222
        %v2224 = vrot.slane %v2199, %v2223
        %v2226 = vadd.f32 %v2219, %v2224
        %2227 = vst.msk [vmem:[%s540] sm:$0xff] %vm1916, %v2226
        %s2228 = sand.u32 %s337, 1
        %s2229 = scalar_lea.sflag [#allocation7], %s2228
        %s2230 = sand.u32 %s337, 1
        %s2231 = smul.addr %s2230, 8
        %s2232 = scalar_lea.vmem [#allocation13], %s2231
        %s2233 = sand.u32 %s365, 1
        %s2234 = scalar_lea.sflag [#allocation15], %s2233
        %s2235 = sand.u32 %s365, 1
        %s2236 = smul.addr %s2235, 32
        %s2237 = scalar_lea.vmem [#allocation14], %s2236
        // Predicated region
        $region93: #{tpu_custom_call.1} parent=71 // pred_check
          %p2238 = pneg %p347
        $region94: #{tpu_custom_call.1} parent=71 // pred_check_branch
          %2240 = sbr.rel (%p2238) target = $region96
        $region95: #{tpu_custom_call.1} parent=71 // pred_region
          %s2242 = ssub.s32 128, 128
          %2243 = vsyncadd %s2229, %s2242
          %s2244 = sadd.s32 %s42, %s41
          %s2245 = smul.addr %s2244, 128
          %s2246 = scalar_lea.hbm %s13, %s2245
          %s2248 = sshll.u32 %s2232, 4
          %s2249 = int_to_ptr.vmem [resolvable:$true] %s2248
          %2251 = dma.vmem_to_hbm [thread:$0]  %s2249, 128, %s2246, %s2229
        $region96: #{tpu_custom_call.1} parent=71 // pred_fallthru
          _
        // Predicated region
        $region97: #{tpu_custom_call.1} parent=71 // pred_check
          %p2252 = pneg %p375
        $region98: #{tpu_custom_call.1} parent=71 // pred_check_branch
          %2254 = sbr.rel (%p2252) target = $region100
        $region99: #{tpu_custom_call.1} parent=71 // pred_region
          %s2256 = ssub.s32 512, 512
          %2257 = vsyncadd %s2234, %s2256
          %s2258 = smul.addr %s41, 4
          %s2259 = sadd.s32 %s42, %s2258
          %s2260 = smul.addr %s2259, 128
          %s2261 = scalar_lea.hbm %s14, %s2260
          %s2262 = sshll.u32 %s2237, 4
          %s2263 = int_to_ptr.vmem [resolvable:$true] %s2262
          %2268 = dma.vmem_to_hbm [thread:$0]  %s2263, 512, %s2261, %s2234, 128, 128, 8
        $region100: #{tpu_custom_call.1} parent=71 // pred_fallthru
          _
      $region72: #{tpu_custom_call.1} parent=5 // pred_fallthru
        _
      %p2269 = scmp.le.s32.totalorder 2, %s32
      // Predicated region
      $region101: #{tpu_custom_call.1} parent=5 // pred_check
        %p2270 = pneg %p2269
      $region102: #{tpu_custom_call.1} parent=5 // pred_check_branch
        %2272 = sbr.rel (%p2270) target = $region104
      $region103: #{tpu_custom_call.1} parent=5 // pred_region
        %s2273 = ssub.s32 %s32, 2
        // Predicated region
        $region105: #{tpu_custom_call.1} parent=103 // pred_check
          %p2274 = pneg %p353
        $region106: #{tpu_custom_call.1} parent=103 // pred_check_branch
          %2276 = sbr.rel (%p2274) target = $region108
        $region107: #{tpu_custom_call.1} parent=103 // pred_region
          %s2277 = sand.u32 %s338, 1
          %s2278 = scalar_lea.sflag [#allocation7], %s2277
          %s2279 = sand.u32 %s338, 1
          %s2280 = smul.addr %s2279, 8
          %s2281 = scalar_lea.vmem [#allocation13], %s2280
          %2282 = dma.done %s2278, 128
        $region108: #{tpu_custom_call.1} parent=103 // pred_fallthru
          _
        // Predicated region
        $region109: #{tpu_custom_call.1} parent=103 // pred_check
          %p2283 = pneg %p381
        $region110: #{tpu_custom_call.1} parent=103 // pred_check_branch
          %2285 = sbr.rel (%p2283) target = $region112
        $region111: #{tpu_custom_call.1} parent=103 // pred_region
          %s2286 = sand.u32 %s366, 1
          %s2287 = scalar_lea.sflag [#allocation15], %s2286
          %s2288 = sand.u32 %s366, 1
          %s2289 = smul.addr %s2288, 32
          %s2290 = scalar_lea.vmem [#allocation14], %s2289
          %2291 = dma.done %s2287, 512
        $region112: #{tpu_custom_call.1} parent=103 // pred_fallthru
          _
      $region104: #{tpu_custom_call.1} parent=5 // pred_fallthru
        _
    $region6: #{tpu_custom_call.1} parent=1 // loop_footer
      %s36 = sadd.s32 1, %s32
    $region7: #{tpu_custom_call.1} parent=1 // loop_footer_branch
      %31 = sbr.rel target = $region3
    $region8: #{tpu_custom_call.1} parent=1 // loop_exit
      _
    %2292 = vsyncpa [#allocation6], 1
    %s2293 = scalar_lea.sflag [#allocation6], 1
    %2294 = vsyncpa %s2293, 1
    %2295 = vsyncpa [#allocation9], 1
    %2296 = vsyncpa [#allocation12], 1
    %2297 = vsyncpa [#allocation7], 1
    %s2298 = scalar_lea.sflag [#allocation7], 1
    %2299 = vsyncpa %s2298, 1
    %2300 = vsyncpa [#allocation15], 1
    %s2301 = scalar_lea.sflag [#allocation15], 1
    %2302 = vsyncpa %s2301, 1

</llo_original>
